<compile_context>
chip_gen: v7x
topology: tpu7x:2x2x1
jax: 0.10.0
libtpu: 0.0.40
codegen_flags: <defaults>
</compile_context>

<pallas_src>
import functools
import math

import jax
import jax.numpy as jnp
from jax import lax
from jax.experimental import pallas as pl
from jax.experimental.pallas import tpu as pltpu


# ----------------------------------------------------------------------------
# Pallas kernel: one grid step = one chunk of `tb` LSTM time steps.
# ----------------------------------------------------------------------------
def _lstm_chunk_kernel(emb_ref, wih_ref, whh_ref, bias_ref, h0_ref, c0_ref,
                       out_ref, hfin_ref, cfin_ref,
                       xg_scr, h_scr, c_scr,
                       *, hidden, batch, tb, rem, matmul_dtype):
    """
    emb_ref  : (tb*B, H)   embedded inputs for this chunk (matmul dtype)
    wih_ref  : (H, 4H)     fused input weights  [i | f | g | o]
    whh_ref  : (H, 4H)     fused recurrent weights
    bias_ref : (1, 4H)     b_ih + b_hh (f32)
    h0/c0    : (B, H)      initial state (f32)
    out_ref  : (tb*B, H)   per-step hidden outputs for this chunk (f32)
    hfin/cfin: (B, H)      final state (written only on the last chunk)
    xg_scr   : (tb*B, 4H)  VMEM scratch for the chunk's gate pre-activations
    h_scr/c_scr: (B, H)    f32 VMEM carry across chunks
    """
    chunk = pl.program_id(0)
    n_chunks = pl.num_programs(0)

    @pl.when(chunk == 0)
    def _():
        h_scr[...] = h0_ref[...]
        c_scr[...] = c0_ref[...]

    # Fused input projection for the whole chunk: one (tb*B, H) x (H, 4H)
    # MXU matmul (fills MXU rows) + fused bias, result stays in VMEM scratch.
    xg_scr[...] = (
        jnp.dot(emb_ref[...], wih_ref[...], preferred_element_type=jnp.float32)
        + bias_ref[...]
    )

    whh = whh_ref[...]  # resident recurrent weight, hoisted out of the loop

    def step(t, carry):
        h, c = carry
        row0 = t * batch  # sublane-aligned by construction (batch % 8 == 0)
        gates = xg_scr[pl.ds(row0, batch), :] + jnp.dot(
            h.astype(matmul_dtype), whh, preferred_element_type=jnp.float32)
        i_g = jax.nn.sigmoid(gates[:, 0 * hidden:1 * hidden])
        f_g = jax.nn.sigmoid(gates[:, 1 * hidden:2 * hidden])
        g_g = jnp.tanh(gates[:, 2 * hidden:3 * hidden])
        o_g = jax.nn.sigmoid(gates[:, 3 * hidden:4 * hidden])
        c_new = f_g * c + i_g * g_g
        h_new = o_g * jnp.tanh(c_new)
        out_ref[pl.ds(row0, batch), :] = h_new.astype(out_ref.dtype)
        return h_new, c_new

    def run(nsteps):
        h_t, c_t = lax.fori_loop(0, nsteps, step, (h_scr[...], c_scr[...]),
                                 unroll=(nsteps if nsteps <= 16 else 8))
        h_scr[...] = h_t
        c_scr[...] = c_t

    if rem == 0:
        run(tb)  # every chunk is full: single static unrolled path
    else:
        # Both trip counts are static -> every chunk keeps the unrolled path.
        @pl.when(chunk < n_chunks - 1)
        def _():
            run(tb)

        @pl.when(chunk == n_chunks - 1)
        def _():
            run(rem)

    # Final-state writes only on the last chunk.
    @pl.when(chunk == n_chunks - 1)
    def _():
        hfin_ref[...] = h_scr[...].astype(hfin_ref.dtype)
        cfin_ref[...] = c_scr[...].astype(cfin_ref.dtype)


def lstm_decode_pallas(emb_flat, wih, whh, bias, h0, c0, *,
                       seq_len, batch, hidden, time_chunk=32):
    """emb_flat: (T*B, H) time-major flattened embedded inputs.

    Returns (outputs_flat (T*B, H) f32, h_T (B, H), c_T (B, H)).
    """
    T, B, H = seq_len, batch, hidden
    GH = 4 * H
    tb = min(T, time_chunk)
    n_chunks = pl.cdiv(T, tb)
    rem = T % tb
    rows = tb * B
    T_pad = n_chunks * tb
    if T_pad != T:
        emb_flat = jnp.pad(emb_flat, ((0, (T_pad - T) * B), (0, 0)))

    kernel = functools.partial(
        _lstm_chunk_kernel, hidden=H, batch=B, tb=tb, rem=rem,
        matmul_dtype=wih.dtype)

    # Explicit VMEM budget (double-buffered streams + resident weights +
    # scratch) with headroom: raises v5e's 16 MiB default scoped limit and
    # keeps realistic shapes honest against v7x's 64 MiB physical VMEM.
    mm_bytes = jnp.dtype(wih.dtype).itemsize
    est = (2 * rows * H * mm_bytes          # embedded blocks (double-buffered)
           + 2 * rows * H * 4               # out blocks (double-buffered)
           + 2 * 2 * H * GH * mm_bytes      # W_ih + W_hh
           + 2 * GH * 4                     # bias
           + 2 * 2 * B * H * 4              # h0, c0
           + rows * GH * 4                  # gate scratch
           + 2 * B * H * 4)                 # h/c carry
    vmem_limit = int(min(max(3 * est, 8 * 2 ** 20), 64 * 2 ** 20))

    grid_spec = pltpu.PrefetchScalarGridSpec(
        num_scalar_prefetch=0,
        grid=(n_chunks,),
        in_specs=[
            pl.BlockSpec((rows, H), lambda c: (c, 0)),   # embedded chunk
            pl.BlockSpec((H, GH), lambda c: (0, 0)),     # W_ih (resident)
            pl.BlockSpec((H, GH), lambda c: (0, 0)),     # W_hh (resident)
            pl.BlockSpec((1, GH), lambda c: (0, 0)),     # fused bias
            pl.BlockSpec((B, H), lambda c: (0, 0)),      # h0
            pl.BlockSpec((B, H), lambda c: (0, 0)),      # c0
        ],
        out_specs=[
            pl.BlockSpec((rows, H), lambda c: (c, 0)),   # per-step hidden
            pl.BlockSpec((B, H), lambda c: (0, 0)),      # final h
            pl.BlockSpec((B, H), lambda c: (0, 0)),      # final c
        ],
        scratch_shapes=[
            pltpu.VMEM((rows, GH), jnp.float32),         # chunk gate pre-acts
            pltpu.VMEM((B, H), jnp.float32),             # h carry
            pltpu.VMEM((B, H), jnp.float32),             # c carry
        ],
    )
    outs, h_fin, c_fin = pl.pallas_call(
        kernel,
        out_shape=(
            jax.ShapeDtypeStruct((T_pad * B, H), jnp.float32),
            jax.ShapeDtypeStruct((B, H), jnp.float32),
            jax.ShapeDtypeStruct((B, H), jnp.float32),
        ),
        grid_spec=grid_spec,
        compiler_params=pltpu.CompilerParams(
            dimension_semantics=("arbitrary",),  # time recurrence is serial
            vmem_limit_bytes=vmem_limit,
        ),
    )(emb_flat, wih, whh, bias, h0, c0)
    return outs[: T * B], h_fin, c_fin


# ----------------------------------------------------------------------------
# Glue: faithful port of the PyTorch Decoder forward.
# ----------------------------------------------------------------------------
def reshape_state(state):
    h_state, c_state = state
    new_h = jnp.concatenate([h_state[:-1], h_state[1:]], axis=2)
    new_c = jnp.concatenate([c_state[:-1], c_state[1:]], axis=2)
    return (new_h, new_c)


class PallasDecoder:
    def __init__(self, hidden_size, tgt_vocab_size, attn, padding_idx, dropout,
                 key, matmul_dtype=jnp.bfloat16):
        self.hidden_size = hidden_size
        self.tgt_vocab_size = tgt_vocab_size
        self.attn = attn            # None in this setup (PyTorch forward skips it)
        self.padding_idx = padding_idx
        self.dropout_p = dropout    # identity in eval mode
        self.matmul_dtype = matmul_dtype

        H, V = hidden_size, tgt_vocab_size
        k_emb, k_wih, k_whh, k_bih, k_bhh = jax.random.split(key, 5)
        scale = 1.0 / math.sqrt(H)

        emb = jax.random.normal(k_emb, (V, H), dtype=jnp.float32) * 0.1
        self.embedding = emb.at[padding_idx].set(0.0)   # padding_idx row zeroed

        # Fused-gate layout: columns ordered [i | f | g | o] (PyTorch LSTM gate
        # order), stored transposed so the kernel does x @ W (== x @ W_ih^T).
        self.wih = jax.random.uniform(k_wih, (H, 4 * H), jnp.float32, -scale, scale)
        self.whh = jax.random.uniform(k_whh, (H, 4 * H), jnp.float32, -scale, scale)
        b_ih = jax.random.uniform(k_bih, (4 * H,), jnp.float32, -scale, scale)
        b_hh = jax.random.uniform(k_bhh, (4 * H,), jnp.float32, -scale, scale)
        self.bias = b_ih + b_hh

        # Matmul-operand copies (bf16 by default: native MXU dtype on all gens,
        # halves VMEM/HBM for the weight/activation streams; gate math is f32).
        self.wih_mm = self.wih.astype(matmul_dtype)
        self.whh_mm = self.whh.astype(matmul_dtype)

    def __call__(self, tgt, dec_state, encoder_outputs, src_lengths):
        h, c = dec_state
        if h.shape[0] == 2:
            # TODO(synk): bidirectional-encoder branch, untested in this setup.
            h, c = reshape_state((h, c))
        if tgt.shape[1] > 1:
            tgt = tgt[:, :-1]

        embedded = jnp.take(self.embedding, tgt, axis=0)        # (B, T, H)
        # dropout == identity (eval mode); attn is None.
        embedded_tm = jnp.transpose(embedded, (1, 0, 2))        # (T, B, H)
        T, B, H = embedded_tm.shape

        # Pad batch to a sublane-friendly multiple (8 for f32 / 16 for packed
        # bf16 operands) so per-step tiles and out stores are not masked.
        sub = 8 if jnp.dtype(self.matmul_dtype).itemsize >= 4 else 16
        B_pad = ((B + sub - 1) // sub) * sub
        h0 = h[0].astype(jnp.float32)
        c0 = c[0].astype(jnp.float32)
        if B_pad != B:
            embedded_tm = jnp.pad(embedded_tm, ((0, 0), (0, B_pad - B), (0, 0)))
            h0 = jnp.pad(h0, ((0, B_pad - B), (0, 0)))
            c0 = jnp.pad(c0, ((0, B_pad - B), (0, 0)))

        emb_flat = embedded_tm.reshape(T * B_pad, H).astype(self.matmul_dtype)

        outs_flat, h_fin, c_fin = lstm_decode_pallas(
            emb_flat, self.wih_mm, self.whh_mm, self.bias[None, :], h0, c0,
            seq_len=T, batch=B_pad, hidden=H)

        outs = outs_flat.reshape(T, B_pad, H)[:, :B, :]
        outputs = jnp.transpose(outs, (1, 0, 2))                # (B, T, H)
        dec_state = (h_fin[None, :B, :], c_fin[None, :B, :])    # (1, B, H) each
        return outputs, dec_state


# ----------------------------------------------------------------------------
# Pure-JAX reference (same fused-gate math); optional operand cast to mimic
# the kernel's matmul dtype exactly.
# ----------------------------------------------------------------------------
def reference_lstm(embedded_tm, wih, whh, b, h0, c0, matmul_dtype=None):
    H = h0.shape[-1]

    def cast(x):
        return x if matmul_dtype is None else x.astype(matmul_dtype)

    wih_c, whh_c = cast(wih), cast(whh)

    def step(carry, x):
        h, c = carry
        gates = (jnp.dot(cast(x), wih_c, preferred_element_type=jnp.float32) + b
                 ) + jnp.dot(cast(h), whh_c, preferred_element_type=jnp.float32)
        i = jax.nn.sigmoid(gates[:, 0 * H:1 * H])
        f = jax.nn.sigmoid(gates[:, 1 * H:2 * H])
        g = jnp.tanh(gates[:, 2 * H:3 * H])
        o = jax.nn.sigmoid(gates[:, 3 * H:4 * H])
        c_new = f * c + i * g
        h_new = o * jnp.tanh(c_new)
        return (h_new, c_new), h_new

    (h_T, c_T), outs = lax.scan(step, (h0, c0), embedded_tm)
    return outs, h_T, c_T


if __name__ == "__main__":
    B, T, H, V = 2, 8, 32, 50
    PAD = 0

    key = jax.random.PRNGKey(0)
    k_params, k_tgt, k_h, k_c, k_enc = jax.random.split(key, 5)

    tgt = jax.random.randint(k_tgt, (B, T), 0, V, dtype=jnp.int32)
    h0 = jax.random.normal(k_h, (1, B, H), dtype=jnp.float32)
    c0 = jax.random.normal(k_c, (1, B, H), dtype=jnp.float32)
    encoder_outputs = jax.random.normal(k_enc, (B, 10, H), dtype=jnp.float32)
    src_lengths = jnp.full((B,), 10, dtype=jnp.int32)

    # Same key -> identical master weights; one bf16-matmul decoder (production
    # config) and one f32-matmul decoder (exactness check).
    dec_bf16 = PallasDecoder(H, V, None, PAD, 0.0, k_params,
                             matmul_dtype=jnp.bfloat16)
    dec_f32 = PallasDecoder(H, V, None, PAD, 0.0, k_params,
                            matmul_dtype=jnp.float32)

    out_bf16, (hf_b, cf_b) = dec_bf16(tgt, (h0, c0), encoder_outputs, src_lengths)
    out_f32, (hf_f, cf_f) = dec_f32(tgt, (h0, c0), encoder_outputs, src_lengths)
    jax.block_until_ready((out_bf16, out_f32))

    # Pure-JAX references.
    tgt_trim = tgt[:, :-1]
    emb_tm = jnp.transpose(jnp.take(dec_f32.embedding, tgt_trim, axis=0), (1, 0, 2))
    ref_o, ref_h, ref_c = reference_lstm(
        emb_tm, dec_f32.wih, dec_f32.whh, dec_f32.bias, h0[0], c0[0])
    ref_o = jnp.transpose(ref_o, (1, 0, 2))
    refb_o, refb_h, refb_c = reference_lstm(
        emb_tm, dec_f32.wih, dec_f32.whh, dec_f32.bias, h0[0], c0[0],
        matmul_dtype=jnp.bfloat16)
    refb_o = jnp.transpose(refb_o, (1, 0, 2))

    assert out_f32.shape == (B, T - 1, H)
    assert hf_f.shape == (1, B, H) and cf_f.shape == (1, B, H)
    assert out_bf16.shape == (B, T - 1, H)

    # f32-matmul kernel vs f32 reference (tight).
    assert jnp.allclose(out_f32, ref_o, atol=1e-3)
    assert jnp.allclose(hf_f[0], ref_h, atol=1e-3)
    assert jnp.allclose(cf_f[0], ref_c, atol=1e-3)

    # bf16-matmul kernel vs bf16-matched reference (tight) and vs exact f32
    # math (expected bf16 drift only).
    assert jnp.allclose(out_bf16, refb_o, atol=5e-3)
    assert jnp.allclose(hf_b[0], refb_h, atol=5e-3)
    assert jnp.allclose(cf_b[0], refb_c, atol=5e-3)
    assert jnp.allclose(out_bf16, ref_o, atol=1e-1)

    print("KERNEL_OK")
</pallas_src>

<mosaic_0001>
module attributes {stable_mosaic.version = 11 : i64} {
  func.func @_lstm_chunk_kernel(%arg0: i32, %arg1: memref<112x32xbf16, #tpu.memory_space<vmem>>, %arg2: memref<32x128xbf16, #tpu.memory_space<vmem>>, %arg3: memref<32x128xbf16, #tpu.memory_space<vmem>>, %arg4: memref<1x128xf32, #tpu.memory_space<vmem>>, %arg5: memref<16x32xf32, #tpu.memory_space<vmem>>, %arg6: memref<16x32xf32, #tpu.memory_space<vmem>>, %arg7: memref<112x32xf32, #tpu.memory_space<vmem>>, %arg8: memref<16x32xf32, #tpu.memory_space<vmem>>, %arg9: memref<16x32xf32, #tpu.memory_space<vmem>>, %arg10: memref<112x128xf32, #tpu.memory_space<vmem>>, %arg11: memref<16x32xf32, #tpu.memory_space<vmem>>, %arg12: memref<16x32xf32, #tpu.memory_space<vmem>>) attributes {dimension_semantics = [#tpu.dimension_semantics<arbitrary>], iteration_bounds = array<i64: 1>, scalar_prefetch = 0 : i64, scratch_operands = 3 : i64, tpu.core_type = #tpu.core_type<tc>, window_params = [{transform_indices = @transform_0, window_bounds = array<i64: 112, 32>}, {pipeline_mode = #tpu.pipeline_mode<synchronous>, transform_indices = @transform_1, window_bounds = array<i64: 32, 128>}, {pipeline_mode = #tpu.pipeline_mode<synchronous>, transform_indices = @transform_2, window_bounds = array<i64: 32, 128>}, {pipeline_mode = #tpu.pipeline_mode<synchronous>, transform_indices = @transform_3, window_bounds = array<i64: 1, 128>}, {pipeline_mode = #tpu.pipeline_mode<synchronous>, transform_indices = @transform_4, window_bounds = array<i64: 16, 32>}, {pipeline_mode = #tpu.pipeline_mode<synchronous>, transform_indices = @transform_5, window_bounds = array<i64: 16, 32>}, {transform_indices = @transform_6, window_bounds = array<i64: 112, 32>}, {pipeline_mode = #tpu.pipeline_mode<synchronous>, transform_indices = @transform_7, window_bounds = array<i64: 16, 32>}, {pipeline_mode = #tpu.pipeline_mode<synchronous>, transform_indices = @transform_8, window_bounds = array<i64: 16, 32>}]} {
    %c0_i32 = arith.constant 0 : i32
    %0 = arith.cmpi eq, %arg0, %c0_i32 : i32
    %1 = arith.extui %0 : i1 to i32
    %c0_i32_0 = arith.constant 0 : i32
    %2 = arith.cmpi ne, %1, %c0_i32_0 : i32
    scf.if %2 {
      %c0_69 = arith.constant 0 : index
      %c0_70 = arith.constant 0 : index
      %249 = vector.load %arg5[%c0_69, %c0_70] : memref<16x32xf32, #tpu.memory_space<vmem>>, vector<16x32xf32>
      %c0_71 = arith.constant 0 : index
      %c0_72 = arith.constant 0 : index
      %250 = vector.load %arg11[%c0_71, %c0_72] : memref<16x32xf32, #tpu.memory_space<vmem>>, vector<16x32xf32>
      tpu.vector_store %arg11[%c0_71, %c0_72], %249 {strides = array<i32>} : memref<16x32xf32, #tpu.memory_space<vmem>>, vector<16x32xf32>,
      %c0_73 = arith.constant 0 : index
      %c0_74 = arith.constant 0 : index
      %251 = vector.load %arg6[%c0_73, %c0_74] : memref<16x32xf32, #tpu.memory_space<vmem>>, vector<16x32xf32>
      %c0_75 = arith.constant 0 : index
      %c0_76 = arith.constant 0 : index
      %252 = vector.load %arg12[%c0_75, %c0_76] : memref<16x32xf32, #tpu.memory_space<vmem>>, vector<16x32xf32>
      tpu.vector_store %arg12[%c0_75, %c0_76], %251 {strides = array<i32>} : memref<16x32xf32, #tpu.memory_space<vmem>>, vector<16x32xf32>,
    } else {
    }
    %c0 = arith.constant 0 : index
    %c0_1 = arith.constant 0 : index
    %3 = vector.load %arg1[%c0, %c0_1] : memref<112x32xbf16, #tpu.memory_space<vmem>>, vector<112x32xbf16>
    %c0_2 = arith.constant 0 : index
    %c0_3 = arith.constant 0 : index
    %4 = vector.load %arg2[%c0_2, %c0_3] : memref<32x128xbf16, #tpu.memory_space<vmem>>, vector<32x128xbf16>
    %cst = arith.constant dense<0.000000e+00> : vector<112x128xf32>
    %5 = tpu.matmul %3, %4, %cst {dimension_numbers = #tpu.dot_dimension_numbers<[1], [0], [0], [1], [0, 0, 1, 1], [], []>} : vector<112x32xbf16>, vector<32x128xbf16>, vector<112x128xf32> -> vector<112x128xf32>
    %c0_4 = arith.constant 0 : index
    %c0_5 = arith.constant 0 : index
    %6 = vector.load %arg4[%c0_4, %c0_5] : memref<1x128xf32, #tpu.memory_space<vmem>>, vector<1x128xf32>
    %7 = vector.broadcast %6 : vector<1x128xf32> to vector<112x128xf32>
    %8 = arith.addf %5, %7 : vector<112x128xf32>
    %c0_6 = arith.constant 0 : index
    %c0_7 = arith.constant 0 : index
    %9 = vector.load %arg10[%c0_6, %c0_7] : memref<112x128xf32, #tpu.memory_space<vmem>>, vector<112x128xf32>
    tpu.vector_store %arg10[%c0_6, %c0_7], %8 {strides = array<i32>} : memref<112x128xf32, #tpu.memory_space<vmem>>, vector<112x128xf32>,
    %c0_8 = arith.constant 0 : index
    %c0_9 = arith.constant 0 : index
    %10 = vector.load %arg3[%c0_8, %c0_9] : memref<32x128xbf16, #tpu.memory_space<vmem>>, vector<32x128xbf16>
    %c0_10 = arith.constant 0 : index
    %c0_11 = arith.constant 0 : index
    %11 = vector.load %arg11[%c0_10, %c0_11] : memref<16x32xf32, #tpu.memory_space<vmem>>, vector<16x32xf32>
    %c0_12 = arith.constant 0 : index
    %c0_13 = arith.constant 0 : index
    %12 = vector.load %arg12[%c0_12, %c0_13] : memref<16x32xf32, #tpu.memory_space<vmem>>, vector<16x32xf32>
    %c0_i32_14 = arith.constant 0 : i32
    %c16_i32 = arith.constant 16 : i32
    %13 = arith.muli %c0_i32_14, %c16_i32 : i32
    %14 = arith.index_cast %13 : i32 to index
    %c0_15 = arith.constant 0 : index
    %15 = vector.load %arg10[%14, %c0_15] : memref<112x128xf32, #tpu.memory_space<vmem>>, vector<16x128xf32>
    %16 = arith.truncf %11 : vector<16x32xf32> to vector<16x32xbf16>
    %cst_16 = arith.constant dense<0.000000e+00> : vector<16x128xf32>
    %17 = tpu.matmul %16, %10, %cst_16 {dimension_numbers = #tpu.dot_dimension_numbers<[1], [0], [0], [1], [0, 0, 1, 1], [], []>} : vector<16x32xbf16>, vector<32x128xbf16>, vector<16x128xf32> -> vector<16x128xf32>
    %18 = arith.addf %15, %17 : vector<16x128xf32>
    %19 = vector.extract_strided_slice %18 {offsets = [0, 0], sizes = [16, 32], strides = [1, 1]} : vector<16x128xf32> to vector<16x32xf32>
    %20 = arith.negf %19 : vector<16x32xf32>
    %21 = math.exp %20 : vector<16x32xf32>
    %cst_17 = arith.constant 1.000000e+00 : f32
    %22 = vector.broadcast %cst_17 : f32 to vector<16x32xf32>
    %23 = arith.addf %22, %21 : vector<16x32xf32>
    %24 = arith.divf %22, %23 : vector<16x32xf32>
    %25 = vector.extract_strided_slice %18 {offsets = [0, 32], sizes = [16, 32], strides = [1, 1]} : vector<16x128xf32> to vector<16x32xf32>
    %26 = arith.negf %25 : vector<16x32xf32>
    %27 = math.exp %26 : vector<16x32xf32>
    %cst_18 = arith.constant 1.000000e+00 : f32
    %28 = vector.broadcast %cst_18 : f32 to vector<16x32xf32>
    %29 = arith.addf %28, %27 : vector<16x32xf32>
    %30 = arith.divf %28, %29 : vector<16x32xf32>
    %31 = vector.extract_strided_slice %18 {offsets = [0, 64], sizes = [16, 32], strides = [1, 1]} : vector<16x128xf32> to vector<16x32xf32>
    %32 = math.tanh %31 : vector<16x32xf32>
    %33 = vector.extract_strided_slice %18 {offsets = [0, 96], sizes = [16, 32], strides = [1, 1]} : vector<16x128xf32> to vector<16x32xf32>
    %34 = arith.negf %33 : vector<16x32xf32>
    %35 = math.exp %34 : vector<16x32xf32>
    %cst_19 = arith.constant 1.000000e+00 : f32
    %36 = vector.broadcast %cst_19 : f32 to vector<16x32xf32>
    %37 = arith.addf %36, %35 : vector<16x32xf32>
    %38 = arith.divf %36, %37 : vector<16x32xf32>
    %39 = arith.mulf %30, %12 : vector<16x32xf32>
    %40 = arith.mulf %24, %32 : vector<16x32xf32>
    %41 = arith.addf %39, %40 : vector<16x32xf32>
    %42 = math.tanh %41 : vector<16x32xf32>
    %43 = arith.mulf %38, %42 : vector<16x32xf32>
    %44 = arith.index_cast %13 : i32 to index
    %c0_20 = arith.constant 0 : index
    %45 = vector.load %arg7[%44, %c0_20] : memref<112x32xf32, #tpu.memory_space<vmem>>, vector<16x32xf32>
    tpu.vector_store %arg7[%44, %c0_20], %43 {strides = array<i32>} : memref<112x32xf32, #tpu.memory_space<vmem>>, vector<16x32xf32>,
    %c1_i32 = arith.constant 1 : i32
    %c16_i32_21 = arith.constant 16 : i32
    %46 = arith.muli %c1_i32, %c16_i32_21 : i32
    %47 = arith.index_cast %46 : i32 to index
    %c0_22 = arith.constant 0 : index
    %48 = vector.load %arg10[%47, %c0_22] : memref<112x128xf32, #tpu.memory_space<vmem>>, vector<16x128xf32>
    %49 = arith.truncf %43 : vector<16x32xf32> to vector<16x32xbf16>
    %cst_23 = arith.constant dense<0.000000e+00> : vector<16x128xf32>
    %50 = tpu.matmul %49, %10, %cst_23 {dimension_numbers = #tpu.dot_dimension_numbers<[1], [0], [0], [1], [0, 0, 1, 1], [], []>} : vector<16x32xbf16>, vector<32x128xbf16>, vector<16x128xf32> -> vector<16x128xf32>
    %51 = arith.addf %48, %50 : vector<16x128xf32>
    %52 = vector.extract_strided_slice %51 {offsets = [0, 0], sizes = [16, 32], strides = [1, 1]} : vector<16x128xf32> to vector<16x32xf32>
    %53 = arith.negf %52 : vector<16x32xf32>
    %54 = math.exp %53 : vector<16x32xf32>
    %cst_24 = arith.constant 1.000000e+00 : f32
    %55 = vector.broadcast %cst_24 : f32 to vector<16x32xf32>
    %56 = arith.addf %55, %54 : vector<16x32xf32>
    %57 = arith.divf %55, %56 : vector<16x32xf32>
    %58 = vector.extract_strided_slice %51 {offsets = [0, 32], sizes = [16, 32], strides = [1, 1]} : vector<16x128xf32> to vector<16x32xf32>
    %59 = arith.negf %58 : vector<16x32xf32>
    %60 = math.exp %59 : vector<16x32xf32>
    %cst_25 = arith.constant 1.000000e+00 : f32
    %61 = vector.broadcast %cst_25 : f32 to vector<16x32xf32>
    %62 = arith.addf %61, %60 : vector<16x32xf32>
    %63 = arith.divf %61, %62 : vector<16x32xf32>
    %64 = vector.extract_strided_slice %51 {offsets = [0, 64], sizes = [16, 32], strides = [1, 1]} : vector<16x128xf32> to vector<16x32xf32>
    %65 = math.tanh %64 : vector<16x32xf32>
    %66 = vector.extract_strided_slice %51 {offsets = [0, 96], sizes = [16, 32], strides = [1, 1]} : vector<16x128xf32> to vector<16x32xf32>
    %67 = arith.negf %66 : vector<16x32xf32>
    %68 = math.exp %67 : vector<16x32xf32>
    %cst_26 = arith.constant 1.000000e+00 : f32
    %69 = vector.broadcast %cst_26 : f32 to vector<16x32xf32>
    %70 = arith.addf %69, %68 : vector<16x32xf32>
    %71 = arith.divf %69, %70 : vector<16x32xf32>
    %72 = arith.mulf %63, %41 : vector<16x32xf32>
    %73 = arith.mulf %57, %65 : vector<16x32xf32>
    %74 = arith.addf %72, %73 : vector<16x32xf32>
    %75 = math.tanh %74 : vector<16x32xf32>
    %76 = arith.mulf %71, %75 : vector<16x32xf32>
    %77 = arith.index_cast %46 : i32 to index
    %c0_27 = arith.constant 0 : index
    %78 = vector.load %arg7[%77, %c0_27] : memref<112x32xf32, #tpu.memory_space<vmem>>, vector<16x32xf32>
    tpu.vector_store %arg7[%77, %c0_27], %76 {strides = array<i32>} : memref<112x32xf32, #tpu.memory_space<vmem>>, vector<16x32xf32>,
    %c2_i32 = arith.constant 2 : i32
    %c16_i32_28 = arith.constant 16 : i32
    %79 = arith.muli %c2_i32, %c16_i32_28 : i32
    %80 = arith.index_cast %79 : i32 to index
    %c0_29 = arith.constant 0 : index
    %81 = vector.load %arg10[%80, %c0_29] : memref<112x128xf32, #tpu.memory_space<vmem>>, vector<16x128xf32>
    %82 = arith.truncf %76 : vector<16x32xf32> to vector<16x32xbf16>
    %cst_30 = arith.constant dense<0.000000e+00> : vector<16x128xf32>
    %83 = tpu.matmul %82, %10, %cst_30 {dimension_numbers = #tpu.dot_dimension_numbers<[1], [0], [0], [1], [0, 0, 1, 1], [], []>} : vector<16x32xbf16>, vector<32x128xbf16>, vector<16x128xf32> -> vector<16x128xf32>
    %84 = arith.addf %81, %83 : vector<16x128xf32>
    %85 = vector.extract_strided_slice %84 {offsets = [0, 0], sizes = [16, 32], strides = [1, 1]} : vector<16x128xf32> to vector<16x32xf32>
    %86 = arith.negf %85 : vector<16x32xf32>
    %87 = math.exp %86 : vector<16x32xf32>
    %cst_31 = arith.constant 1.000000e+00 : f32
    %88 = vector.broadcast %cst_31 : f32 to vector<16x32xf32>
    %89 = arith.addf %88, %87 : vector<16x32xf32>
    %90 = arith.divf %88, %89 : vector<16x32xf32>
    %91 = vector.extract_strided_slice %84 {offsets = [0, 32], sizes = [16, 32], strides = [1, 1]} : vector<16x128xf32> to vector<16x32xf32>
    %92 = arith.negf %91 : vector<16x32xf32>
    %93 = math.exp %92 : vector<16x32xf32>
    %cst_32 = arith.constant 1.000000e+00 : f32
    %94 = vector.broadcast %cst_32 : f32 to vector<16x32xf32>
    %95 = arith.addf %94, %93 : vector<16x32xf32>
    %96 = arith.divf %94, %95 : vector<16x32xf32>
    %97 = vector.extract_strided_slice %84 {offsets = [0, 64], sizes = [16, 32], strides = [1, 1]} : vector<16x128xf32> to vector<16x32xf32>
    %98 = math.tanh %97 : vector<16x32xf32>
    %99 = vector.extract_strided_slice %84 {offsets = [0, 96], sizes = [16, 32], strides = [1, 1]} : vector<16x128xf32> to vector<16x32xf32>
    %100 = arith.negf %99 : vector<16x32xf32>
    %101 = math.exp %100 : vector<16x32xf32>
    %cst_33 = arith.constant 1.000000e+00 : f32
    %102 = vector.broadcast %cst_33 : f32 to vector<16x32xf32>
    %103 = arith.addf %102, %101 : vector<16x32xf32>
    %104 = arith.divf %102, %103 : vector<16x32xf32>
    %105 = arith.mulf %96, %74 : vector<16x32xf32>
    %106 = arith.mulf %90, %98 : vector<16x32xf32>
    %107 = arith.addf %105, %106 : vector<16x32xf32>
    %108 = math.tanh %107 : vector<16x32xf32>
    %109 = arith.mulf %104, %108 : vector<16x32xf32>
    %110 = arith.index_cast %79 : i32 to index
    %c0_34 = arith.constant 0 : index
    %111 = vector.load %arg7[%110, %c0_34] : memref<112x32xf32, #tpu.memory_space<vmem>>, vector<16x32xf32>
    tpu.vector_store %arg7[%110, %c0_34], %109 {strides = array<i32>} : memref<112x32xf32, #tpu.memory_space<vmem>>, vector<16x32xf32>,
    %c3_i32 = arith.constant 3 : i32
    %c16_i32_35 = arith.constant 16 : i32
    %112 = arith.muli %c3_i32, %c16_i32_35 : i32
    %113 = arith.index_cast %112 : i32 to index
    %c0_36 = arith.constant 0 : index
    %114 = vector.load %arg10[%113, %c0_36] : memref<112x128xf32, #tpu.memory_space<vmem>>, vector<16x128xf32>
    %115 = arith.truncf %109 : vector<16x32xf32> to vector<16x32xbf16>
    %cst_37 = arith.constant dense<0.000000e+00> : vector<16x128xf32>
    %116 = tpu.matmul %115, %10, %cst_37 {dimension_numbers = #tpu.dot_dimension_numbers<[1], [0], [0], [1], [0, 0, 1, 1], [], []>} : vector<16x32xbf16>, vector<32x128xbf16>, vector<16x128xf32> -> vector<16x128xf32>
    %117 = arith.addf %114, %116 : vector<16x128xf32>
    %118 = vector.extract_strided_slice %117 {offsets = [0, 0], sizes = [16, 32], strides = [1, 1]} : vector<16x128xf32> to vector<16x32xf32>
    %119 = arith.negf %118 : vector<16x32xf32>
    %120 = math.exp %119 : vector<16x32xf32>
    %cst_38 = arith.constant 1.000000e+00 : f32
    %121 = vector.broadcast %cst_38 : f32 to vector<16x32xf32>
    %122 = arith.addf %121, %120 : vector<16x32xf32>
    %123 = arith.divf %121, %122 : vector<16x32xf32>
    %124 = vector.extract_strided_slice %117 {offsets = [0, 32], sizes = [16, 32], strides = [1, 1]} : vector<16x128xf32> to vector<16x32xf32>
    %125 = arith.negf %124 : vector<16x32xf32>
    %126 = math.exp %125 : vector<16x32xf32>
    %cst_39 = arith.constant 1.000000e+00 : f32
    %127 = vector.broadcast %cst_39 : f32 to vector<16x32xf32>
    %128 = arith.addf %127, %126 : vector<16x32xf32>
    %129 = arith.divf %127, %128 : vector<16x32xf32>
    %130 = vector.extract_strided_slice %117 {offsets = [0, 64], sizes = [16, 32], strides = [1, 1]} : vector<16x128xf32> to vector<16x32xf32>
    %131 = math.tanh %130 : vector<16x32xf32>
    %132 = vector.extract_strided_slice %117 {offsets = [0, 96], sizes = [16, 32], strides = [1, 1]} : vector<16x128xf32> to vector<16x32xf32>
    %133 = arith.negf %132 : vector<16x32xf32>
    %134 = math.exp %133 : vector<16x32xf32>
    %cst_40 = arith.constant 1.000000e+00 : f32
    %135 = vector.broadcast %cst_40 : f32 to vector<16x32xf32>
    %136 = arith.addf %135, %134 : vector<16x32xf32>
    %137 = arith.divf %135, %136 : vector<16x32xf32>
    %138 = arith.mulf %129, %107 : vector<16x32xf32>
    %139 = arith.mulf %123, %131 : vector<16x32xf32>
    %140 = arith.addf %138, %139 : vector<16x32xf32>
    %141 = math.tanh %140 : vector<16x32xf32>
    %142 = arith.mulf %137, %141 : vector<16x32xf32>
    %143 = arith.index_cast %112 : i32 to index
    %c0_41 = arith.constant 0 : index
    %144 = vector.load %arg7[%143, %c0_41] : memref<112x32xf32, #tpu.memory_space<vmem>>, vector<16x32xf32>
    tpu.vector_store %arg7[%143, %c0_41], %142 {strides = array<i32>} : memref<112x32xf32, #tpu.memory_space<vmem>>, vector<16x32xf32>,
    %c4_i32 = arith.constant 4 : i32
    %c16_i32_42 = arith.constant 16 : i32
    %145 = arith.muli %c4_i32, %c16_i32_42 : i32
    %146 = arith.index_cast %145 : i32 to index
    %c0_43 = arith.constant 0 : index
    %147 = vector.load %arg10[%146, %c0_43] : memref<112x128xf32, #tpu.memory_space<vmem>>, vector<16x128xf32>
    %148 = arith.truncf %142 : vector<16x32xf32> to vector<16x32xbf16>
    %cst_44 = arith.constant dense<0.000000e+00> : vector<16x128xf32>
    %149 = tpu.matmul %148, %10, %cst_44 {dimension_numbers = #tpu.dot_dimension_numbers<[1], [0], [0], [1], [0, 0, 1, 1], [], []>} : vector<16x32xbf16>, vector<32x128xbf16>, vector<16x128xf32> -> vector<16x128xf32>
    %150 = arith.addf %147, %149 : vector<16x128xf32>
    %151 = vector.extract_strided_slice %150 {offsets = [0, 0], sizes = [16, 32], strides = [1, 1]} : vector<16x128xf32> to vector<16x32xf32>
    %152 = arith.negf %151 : vector<16x32xf32>
    %153 = math.exp %152 : vector<16x32xf32>
    %cst_45 = arith.constant 1.000000e+00 : f32
    %154 = vector.broadcast %cst_45 : f32 to vector<16x32xf32>
    %155 = arith.addf %154, %153 : vector<16x32xf32>
    %156 = arith.divf %154, %155 : vector<16x32xf32>
    %157 = vector.extract_strided_slice %150 {offsets = [0, 32], sizes = [16, 32], strides = [1, 1]} : vector<16x128xf32> to vector<16x32xf32>
    %158 = arith.negf %157 : vector<16x32xf32>
    %159 = math.exp %158 : vector<16x32xf32>
    %cst_46 = arith.constant 1.000000e+00 : f32
    %160 = vector.broadcast %cst_46 : f32 to vector<16x32xf32>
    %161 = arith.addf %160, %159 : vector<16x32xf32>
    %162 = arith.divf %160, %161 : vector<16x32xf32>
    %163 = vector.extract_strided_slice %150 {offsets = [0, 64], sizes = [16, 32], strides = [1, 1]} : vector<16x128xf32> to vector<16x32xf32>
    %164 = math.tanh %163 : vector<16x32xf32>
    %165 = vector.extract_strided_slice %150 {offsets = [0, 96], sizes = [16, 32], strides = [1, 1]} : vector<16x128xf32> to vector<16x32xf32>
    %166 = arith.negf %165 : vector<16x32xf32>
    %167 = math.exp %166 : vector<16x32xf32>
    %cst_47 = arith.constant 1.000000e+00 : f32
    %168 = vector.broadcast %cst_47 : f32 to vector<16x32xf32>
    %169 = arith.addf %168, %167 : vector<16x32xf32>
    %170 = arith.divf %168, %169 : vector<16x32xf32>
    %171 = arith.mulf %162, %140 : vector<16x32xf32>
    %172 = arith.mulf %156, %164 : vector<16x32xf32>
    %173 = arith.addf %171, %172 : vector<16x32xf32>
    %174 = math.tanh %173 : vector<16x32xf32>
    %175 = arith.mulf %170, %174 : vector<16x32xf32>
    %176 = arith.index_cast %145 : i32 to index
    %c0_48 = arith.constant 0 : index
    %177 = vector.load %arg7[%176, %c0_48] : memref<112x32xf32, #tpu.memory_space<vmem>>, vector<16x32xf32>
    tpu.vector_store %arg7[%176, %c0_48], %175 {strides = array<i32>} : memref<112x32xf32, #tpu.memory_space<vmem>>, vector<16x32xf32>,
    %c5_i32 = arith.constant 5 : i32
    %c16_i32_49 = arith.constant 16 : i32
    %178 = arith.muli %c5_i32, %c16_i32_49 : i32
    %179 = arith.index_cast %178 : i32 to index
    %c0_50 = arith.constant 0 : index
    %180 = vector.load %arg10[%179, %c0_50] : memref<112x128xf32, #tpu.memory_space<vmem>>, vector<16x128xf32>
    %181 = arith.truncf %175 : vector<16x32xf32> to vector<16x32xbf16>
    %cst_51 = arith.constant dense<0.000000e+00> : vector<16x128xf32>
    %182 = tpu.matmul %181, %10, %cst_51 {dimension_numbers = #tpu.dot_dimension_numbers<[1], [0], [0], [1], [0, 0, 1, 1], [], []>} : vector<16x32xbf16>, vector<32x128xbf16>, vector<16x128xf32> -> vector<16x128xf32>
    %183 = arith.addf %180, %182 : vector<16x128xf32>
    %184 = vector.extract_strided_slice %183 {offsets = [0, 0], sizes = [16, 32], strides = [1, 1]} : vector<16x128xf32> to vector<16x32xf32>
    %185 = arith.negf %184 : vector<16x32xf32>
    %186 = math.exp %185 : vector<16x32xf32>
    %cst_52 = arith.constant 1.000000e+00 : f32
    %187 = vector.broadcast %cst_52 : f32 to vector<16x32xf32>
    %188 = arith.addf %187, %186 : vector<16x32xf32>
    %189 = arith.divf %187, %188 : vector<16x32xf32>
    %190 = vector.extract_strided_slice %183 {offsets = [0, 32], sizes = [16, 32], strides = [1, 1]} : vector<16x128xf32> to vector<16x32xf32>
    %191 = arith.negf %190 : vector<16x32xf32>
    %192 = math.exp %191 : vector<16x32xf32>
    %cst_53 = arith.constant 1.000000e+00 : f32
    %193 = vector.broadcast %cst_53 : f32 to vector<16x32xf32>
    %194 = arith.addf %193, %192 : vector<16x32xf32>
    %195 = arith.divf %193, %194 : vector<16x32xf32>
    %196 = vector.extract_strided_slice %183 {offsets = [0, 64], sizes = [16, 32], strides = [1, 1]} : vector<16x128xf32> to vector<16x32xf32>
    %197 = math.tanh %196 : vector<16x32xf32>
    %198 = vector.extract_strided_slice %183 {offsets = [0, 96], sizes = [16, 32], strides = [1, 1]} : vector<16x128xf32> to vector<16x32xf32>
    %199 = arith.negf %198 : vector<16x32xf32>
    %200 = math.exp %199 : vector<16x32xf32>
    %cst_54 = arith.constant 1.000000e+00 : f32
    %201 = vector.broadcast %cst_54 : f32 to vector<16x32xf32>
    %202 = arith.addf %201, %200 : vector<16x32xf32>
    %203 = arith.divf %201, %202 : vector<16x32xf32>
    %204 = arith.mulf %195, %173 : vector<16x32xf32>
    %205 = arith.mulf %189, %197 : vector<16x32xf32>
    %206 = arith.addf %204, %205 : vector<16x32xf32>
    %207 = math.tanh %206 : vector<16x32xf32>
    %208 = arith.mulf %203, %207 : vector<16x32xf32>
    %209 = arith.index_cast %178 : i32 to index
    %c0_55 = arith.constant 0 : index
    %210 = vector.load %arg7[%209, %c0_55] : memref<112x32xf32, #tpu.memory_space<vmem>>, vector<16x32xf32>
    tpu.vector_store %arg7[%209, %c0_55], %208 {strides = array<i32>} : memref<112x32xf32, #tpu.memory_space<vmem>>, vector<16x32xf32>,
    %c6_i32 = arith.constant 6 : i32
    %c16_i32_56 = arith.constant 16 : i32
    %211 = arith.muli %c6_i32, %c16_i32_56 : i32
    %212 = arith.index_cast %211 : i32 to index
    %c0_57 = arith.constant 0 : index
    %213 = vector.load %arg10[%212, %c0_57] : memref<112x128xf32, #tpu.memory_space<vmem>>, vector<16x128xf32>
    %214 = arith.truncf %208 : vector<16x32xf32> to vector<16x32xbf16>
    %cst_58 = arith.constant dense<0.000000e+00> : vector<16x128xf32>
    %215 = tpu.matmul %214, %10, %cst_58 {dimension_numbers = #tpu.dot_dimension_numbers<[1], [0], [0], [1], [0, 0, 1, 1], [], []>} : vector<16x32xbf16>, vector<32x128xbf16>, vector<16x128xf32> -> vector<16x128xf32>
    %216 = arith.addf %213, %215 : vector<16x128xf32>
    %217 = vector.extract_strided_slice %216 {offsets = [0, 0], sizes = [16, 32], strides = [1, 1]} : vector<16x128xf32> to vector<16x32xf32>
    %218 = arith.negf %217 : vector<16x32xf32>
    %219 = math.exp %218 : vector<16x32xf32>
    %cst_59 = arith.constant 1.000000e+00 : f32
    %220 = vector.broadcast %cst_59 : f32 to vector<16x32xf32>
    %221 = arith.addf %220, %219 : vector<16x32xf32>
    %222 = arith.divf %220, %221 : vector<16x32xf32>
    %223 = vector.extract_strided_slice %216 {offsets = [0, 32], sizes = [16, 32], strides = [1, 1]} : vector<16x128xf32> to vector<16x32xf32>
    %224 = arith.negf %223 : vector<16x32xf32>
    %225 = math.exp %224 : vector<16x32xf32>
    %cst_60 = arith.constant 1.000000e+00 : f32
    %226 = vector.broadcast %cst_60 : f32 to vector<16x32xf32>
    %227 = arith.addf %226, %225 : vector<16x32xf32>
    %228 = arith.divf %226, %227 : vector<16x32xf32>
    %229 = vector.extract_strided_slice %216 {offsets = [0, 64], sizes = [16, 32], strides = [1, 1]} : vector<16x128xf32> to vector<16x32xf32>
    %230 = math.tanh %229 : vector<16x32xf32>
    %231 = vector.extract_strided_slice %216 {offsets = [0, 96], sizes = [16, 32], strides = [1, 1]} : vector<16x128xf32> to vector<16x32xf32>
    %232 = arith.negf %231 : vector<16x32xf32>
    %233 = math.exp %232 : vector<16x32xf32>
    %cst_61 = arith.constant 1.000000e+00 : f32
    %234 = vector.broadcast %cst_61 : f32 to vector<16x32xf32>
    %235 = arith.addf %234, %233 : vector<16x32xf32>
    %236 = arith.divf %234, %235 : vector<16x32xf32>
    %237 = arith.mulf %228, %206 : vector<16x32xf32>
    %238 = arith.mulf %222, %230 : vector<16x32xf32>
    %239 = arith.addf %237, %238 : vector<16x32xf32>
    %240 = math.tanh %239 : vector<16x32xf32>
    %241 = arith.mulf %236, %240 : vector<16x32xf32>
    %242 = arith.index_cast %211 : i32 to index
    %c0_62 = arith.constant 0 : index
    %243 = vector.load %arg7[%242, %c0_62] : memref<112x32xf32, #tpu.memory_space<vmem>>, vector<16x32xf32>
    tpu.vector_store %arg7[%242, %c0_62], %241 {strides = array<i32>} : memref<112x32xf32, #tpu.memory_space<vmem>>, vector<16x32xf32>,
    %c7_i32 = arith.constant 7 : i32
    %c0_63 = arith.constant 0 : index
    %c0_64 = arith.constant 0 : index
    %244 = vector.load %arg11[%c0_63, %c0_64] : memref<16x32xf32, #tpu.memory_space<vmem>>, vector<16x32xf32>
    tpu.vector_store %arg11[%c0_63, %c0_64], %241 {strides = array<i32>} : memref<16x32xf32, #tpu.memory_space<vmem>>, vector<16x32xf32>,
    %c0_65 = arith.constant 0 : index
    %c0_66 = arith.constant 0 : index
    %245 = vector.load %arg12[%c0_65, %c0_66] : memref<16x32xf32, #tpu.memory_space<vmem>>, vector<16x32xf32>
    tpu.vector_store %arg12[%c0_65, %c0_66], %239 {strides = array<i32>} : memref<16x32xf32, #tpu.memory_space<vmem>>, vector<16x32xf32>,
    %c0_i32_67 = arith.constant 0 : i32
    %246 = arith.cmpi eq, %arg0, %c0_i32_67 : i32
    %247 = arith.extui %246 : i1 to i32
    %c0_i32_68 = arith.constant 0 : i32
    %248 = arith.cmpi ne, %247, %c0_i32_68 : i32
    scf.if %248 {
      %c0_69 = arith.constant 0 : index
      %c0_70 = arith.constant 0 : index
      %249 = vector.load %arg11[%c0_69, %c0_70] : memref<16x32xf32, #tpu.memory_space<vmem>>, vector<16x32xf32>
      %c0_71 = arith.constant 0 : index
      %c0_72 = arith.constant 0 : index
      %250 = vector.load %arg8[%c0_71, %c0_72] : memref<16x32xf32, #tpu.memory_space<vmem>>, vector<16x32xf32>
      tpu.vector_store %arg8[%c0_71, %c0_72], %249 {strides = array<i32>} : memref<16x32xf32, #tpu.memory_space<vmem>>, vector<16x32xf32>,
      %c0_73 = arith.constant 0 : index
      %c0_74 = arith.constant 0 : index
      %251 = vector.load %arg12[%c0_73, %c0_74] : memref<16x32xf32, #tpu.memory_space<vmem>>, vector<16x32xf32>
      %c0_75 = arith.constant 0 : index
      %c0_76 = arith.constant 0 : index
      %252 = vector.load %arg9[%c0_75, %c0_76] : memref<16x32xf32, #tpu.memory_space<vmem>>, vector<16x32xf32>
      tpu.vector_store %arg9[%c0_75, %c0_76], %251 {strides = array<i32>} : memref<16x32xf32, #tpu.memory_space<vmem>>, vector<16x32xf32>,
    } else {
    }
    return
  }
  func.func @transform_0(%arg0: i32) -> (i32, i32) {
    %c0_i32 = arith.constant 0 : i32
    %c0_i32_0 = arith.constant 0 : i32
    return %arg0, %c0_i32 : i32, i32
  }
  func.func @transform_1(%arg0: i32) -> (i32, i32) {
    %c0_i32 = arith.constant 0 : i32
    %c0_i32_0 = arith.constant 0 : i32
    %c0_i32_1 = arith.constant 0 : i32
    return %c0_i32, %c0_i32_0 : i32, i32
  }
  func.func @transform_2(%arg0: i32) -> (i32, i32) {
    %c0_i32 = arith.constant 0 : i32
    %c0_i32_0 = arith.constant 0 : i32
    %c0_i32_1 = arith.constant 0 : i32
    return %c0_i32, %c0_i32_0 : i32, i32
  }
  func.func @transform_3(%arg0: i32) -> (i32, i32) {
    %c0_i32 = arith.constant 0 : i32
    %c0_i32_0 = arith.constant 0 : i32
    %c0_i32_1 = arith.constant 0 : i32
    return %c0_i32, %c0_i32_0 : i32, i32
  }
  func.func @transform_4(%arg0: i32) -> (i32, i32) {
    %c0_i32 = arith.constant 0 : i32
    %c0_i32_0 = arith.constant 0 : i32
    %c0_i32_1 = arith.constant 0 : i32
    return %c0_i32, %c0_i32_0 : i32, i32
  }
  func.func @transform_5(%arg0: i32) -> (i32, i32) {
    %c0_i32 = arith.constant 0 : i32
    %c0_i32_0 = arith.constant 0 : i32
    %c0_i32_1 = arith.constant 0 : i32
    return %c0_i32, %c0_i32_0 : i32, i32
  }
  func.func @transform_6(%arg0: i32) -> (i32, i32) {
    %c0_i32 = arith.constant 0 : i32
    %c0_i32_0 = arith.constant 0 : i32
    return %arg0, %c0_i32 : i32, i32
  }
  func.func @transform_7(%arg0: i32) -> (i32, i32) {
    %c0_i32 = arith.constant 0 : i32
    %c0_i32_0 = arith.constant 0 : i32
    %c0_i32_1 = arith.constant 0 : i32
    return %c0_i32, %c0_i32_0 : i32, i32
  }
  func.func @transform_8(%arg0: i32) -> (i32, i32) {
    %c0_i32 = arith.constant 0 : i32
    %c0_i32_0 = arith.constant 0 : i32
    %c0_i32_1 = arith.constant 0 : i32
    return %c0_i32, %c0_i32_0 : i32, i32
  }
}

</mosaic_0001>

<llo_original>
// kernel: tpu_custom_call.1
$region0: #{tpu_custom_call.1}
  #allocation0 [shape = 'u32[]', space=smem, size = 0x4, offset = 0x4, fixed_abs, tag = 'smem constant byte address 0x4 - core index']
  #allocation1 [shape = 'u32[144,128]{1,0:T(1,128)}', space=vmem, size = 0x12000, scoped, tag = 'internal scratch']
  #allocation2 [shape = 'f32[112,128]{1,0:T(8,128)}', space=vmem, size = 0xe000, scoped, tag = 'scratch operand']
  #allocation3 [shape = 'f32[16,32]{1,0:T(8,128)}', space=vmem, size = 0x2000, scoped, tag = 'scratch operand']
  #allocation4 [shape = 'f32[16,32]{1,0:T(8,128)}', space=vmem, size = 0x2000, scoped, tag = 'scratch operand']
  %s0 = inlined_call_operand.vmem [shape: bf16[112,32], index: 0, kind: input, shape index: {}]
  %s1 = inlined_call_operand.vmem [shape: bf16[32,128], index: 1, kind: input, shape index: {}]
  %s2 = inlined_call_operand.vmem [shape: bf16[32,128], index: 2, kind: input, shape index: {}]
  %s3 = inlined_call_operand.vmem [shape: f32[1,128], index: 3, kind: input, shape index: {}]
  %s4 = inlined_call_operand.vmem [shape: f32[16,32], index: 4, kind: input, shape index: {}]
  %s5 = inlined_call_operand.vmem [shape: f32[16,32], index: 5, kind: input, shape index: {}]
  %s6 = inlined_call_operand.vmem [shape: f32[112,32], index: 6, kind: output, shape index: {0}]
  %s7 = inlined_call_operand.hbm [shape: f32[16,32], index: 7, kind: output, shape index: {1}]
  %s8 = inlined_call_operand.hbm [shape: f32[16,32], index: 8, kind: output, shape index: {2}]
  %9 = xla_tuple %s6, %s7, %s8
  %s10 = sld [smem:[#allocation0]]
  $region58: #{tpu_custom_call.1} parent=0
    _
  %s12 = ssub.s32 1, %s10
  %s13 = scalar_select 0, %s12, %s10
  $region1: #{tpu_custom_call.1} parent=0
    #allocation5 [shape = 'u8[8192]{0}', space=vmem, size = 0x2000, scoped, tag = 'output window, operand 1, single buffered']
    #allocation6 [shape = 's32[1]{0}', space=sflag, size = 0x4, scoped, tag = 'scoped memory for tpu_custom_call.1']
    #allocation7 [shape = 'u8[8192]{0}', space=vmem, size = 0x2000, scoped, tag = 'output window, operand 2, single buffered']
    #allocation8 [shape = 's32[1]{0}', space=sflag, size = 0x4, scoped, tag = 'scoped memory for tpu_custom_call.1']
    %14 = vsyncpa [#allocation6], 0
    %15 = vsyncpa [#allocation8], 0
    // Predicated region
    $region2: #{tpu_custom_call.1} parent=1 // pred_check
      _
    $region3: #{tpu_custom_call.1} parent=1 // pred_check_branch
      %17 = sbr.rel (0) target = $region5
    $region4: #{tpu_custom_call.1} parent=1 // pred_region
      _
    $region5: #{tpu_custom_call.1} parent=1 // pred_fallthru
      _
    // Predicated region
    $region6: #{tpu_custom_call.1} parent=1 // pred_check
      _
    $region7: #{tpu_custom_call.1} parent=1 // pred_check_branch
      %19 = sbr.rel (0) target = $region9
    $region8: #{tpu_custom_call.1} parent=1 // pred_region
      _
    $region9: #{tpu_custom_call.1} parent=1 // pred_fallthru
      _
    // Predicated region
    $region10: #{tpu_custom_call.1} parent=1 // pred_check
      _
    $region11: #{tpu_custom_call.1} parent=1 // pred_check_branch
      %21 = sbr.rel (0) target = $region13
    $region12: #{tpu_custom_call.1} parent=1 // pred_region
      _
    $region13: #{tpu_custom_call.1} parent=1 // pred_fallthru
      _
    // Predicated region
    $region14: #{tpu_custom_call.1} parent=1 // pred_check
      _
    $region15: #{tpu_custom_call.1} parent=1 // pred_check_branch
      %23 = sbr.rel (0) target = $region17
    $region16: #{tpu_custom_call.1} parent=1 // pred_region
      _
    $region17: #{tpu_custom_call.1} parent=1 // pred_fallthru
      _
    // Predicated region
    $region18: #{tpu_custom_call.1} parent=1 // pred_check
      _
    $region19: #{tpu_custom_call.1} parent=1 // pred_check_branch
      %25 = sbr.rel (0) target = $region21
    $region20: #{tpu_custom_call.1} parent=1 // pred_region
      _
    $region21: #{tpu_custom_call.1} parent=1 // pred_fallthru
      _
    // Predicated region
    $region22: #{tpu_custom_call.1} parent=1 // pred_check
      _
    $region23: #{tpu_custom_call.1} parent=1 // pred_check_branch
      %27 = sbr.rel (0) target = $region25
    $region24: #{tpu_custom_call.1} parent=1 // pred_region
      _
    $region25: #{tpu_custom_call.1} parent=1 // pred_fallthru
      _
    %p29 = scmp.eq.s32.totalorder 0, 0
    // Predicated region
    $region26: #{tpu_custom_call.1} parent=1 // pred_check
      %p30 = pneg %p29
    $region27: #{tpu_custom_call.1} parent=1 // pred_check_branch
      %32 = sbr.rel (%p30) target = $region29
    $region28: #{tpu_custom_call.1} parent=1 // pred_region
      %v33 = vld [vmem:[%s4] sm:$0xff]
      %v34 = vld [vmem:[%s4 + $0x8] sm:$0xff]
      %vm35 = vcmask 261120
      %36 = vst.msk [vmem:[#allocation3] sm:$0xff] %vm35, %v33
      %37 = vst.msk [vmem:[#allocation3 + $0x8] sm:$0xff] %vm35, %v34
      %v38 = vld [vmem:[%s5] sm:$0xff]
      %v39 = vld [vmem:[%s5 + $0x8] sm:$0xff]
      %40 = vst.msk [vmem:[#allocation4] sm:$0xff] %vm35, %v38
      %41 = vst.msk [vmem:[#allocation4 + $0x8] sm:$0xff] %vm35, %v39
    $region29: #{tpu_custom_call.1} parent=1 // pred_fallthru
      _
    %v42 = vld [vmem:[%s0] sm:$0xf]
    %v43 = vld [vmem:[%s0 + $0x4] sm:$0xf]
    %v44 = vld [vmem:[%s0 + $0x8] sm:$0xf]
    %v45 = vld [vmem:[%s0 + $0xc] sm:$0xf]
    %v46 = vld [vmem:[%s0 + $0x10] sm:$0xf]
    %v47 = vld [vmem:[%s0 + $0x14] sm:$0xf]
    %v48 = vld [vmem:[%s0 + $0x18] sm:$0xf]
    %v49 = vld [vmem:[%s0 + $0x1c] sm:$0xf]
    %v50 = vld [vmem:[%s0 + $0x20] sm:$0xf]
    %v51 = vld [vmem:[%s0 + $0x24] sm:$0xf]
    %v52 = vld [vmem:[%s0 + $0x28] sm:$0xf]
    %v53 = vld [vmem:[%s0 + $0x2c] sm:$0xf]
    %v54 = vld [vmem:[%s0 + $0x30] sm:$0xf]
    %v55 = vld [vmem:[%s0 + $0x34] sm:$0xf]
    %v56 = vld [vmem:[%s1] sm:$0xf]
    %v57 = vld [vmem:[%s1 + $0x4] sm:$0xf]
    %v58 = vld [vmem:[%s1 + $0x8] sm:$0xf]
    %v59 = vld [vmem:[%s1 + $0xc] sm:$0xf]
    %v60 = vld [vmem:[%s3] sm:$0x1]
    %v62 = vlaneseq
    %v63 = vshrl.u32 %v62, 7
    %v64 = vsub.s32 0, %v63
    %v65 = vrot.slane %v60, %v64
    %v81 = vunpack.c.l.b16 %v42
    %v82 = vunpack.c.l.b16 %v43
    %v83 = vunpack.c.l.b16 %v44
    %v84 = vunpack.c.l.b16 %v45
    %v85 = vunpack.c.l.b16 %v46
    %v86 = vunpack.c.l.b16 %v47
    %v87 = vunpack.c.l.b16 %v48
    %v88 = vunpack.c.l.b16 %v49
    %v89 = vunpack.c.l.b16 %v50
    %v90 = vunpack.c.l.b16 %v51
    %v91 = vunpack.c.l.b16 %v52
    %v92 = vunpack.c.l.b16 %v53
    %v93 = vunpack.c.l.b16 %v54
    %v94 = vunpack.c.l.b16 %v55
    %v95 = vpack.c.b16 %v82, %v81
    %v96 = vpack.c.b16 %v84, %v83
    %v97 = vpack.c.b16 %v86, %v85
    %v98 = vpack.c.b16 %v88, %v87
    %v99 = vpack.c.b16 %v90, %v89
    %v100 = vpack.c.b16 %v92, %v91
    %v101 = vpack.c.b16 %v94, %v93
    %v106 = vunpack.c.l.b16 %v56
    %v107 = vunpack.c.l.b16 %v57
    %v108 = vunpack.c.l.b16 %v58
    %v109 = vunpack.c.l.b16 %v59
    %v110 = vpack.c.b16 %v107, %v106
    %v111 = vpack.c.b16 %v109, %v108
    %vm114 = vcmask 261120
    %v116 = vsel %vm114, %v95, 0
    %v119 = vsel %vm114, %v96, 0
    %v122 = vsel %vm114, %v97, 0
    %v125 = vsel %vm114, %v98, 0
    %v128 = vsel %vm114, %v99, 0
    %v131 = vsel %vm114, %v100, 0
    %v134 = vsel %vm114, %v101, 0
    %136 = vmatprep.subr.bf16.mxu0 0
    %137 = vmatpush1.bf16.msra.mxu0 %v110
    %138 = vmatprep.subr.bf16.mxu0 0
    %139 = vmatpush1.bf16.msra.mxu0 %v111
    %140 = vmatprep.subr.bf16.mxu0 0
    %141 = vmatpush1.bf16.msra.mxu0 0
    %142 = vmatprep.subr.bf16.mxu0 0
    %143 = vmatpush1.bf16.msra.mxu0 0
    %144 = vmatprep.subr.bf16.mxu0 0
    %145 = vmatpush1.bf16.msra.mxu0 0
    %146 = vmatprep.subr.bf16.mxu0 0
    %147 = vmatpush1.bf16.msra.mxu0 0
    %148 = vmatprep.subr.bf16.mxu0 0
    %149 = vmatpush1.bf16.msra.mxu0 0
    %150 = vmatprep.subr.bf16.mxu0 0
    %151 = vmatpush1.bf16.msra.mxu0 0
    %152 = vmatprep.subr.bf16.mxu0 0
    %153 = vmatpush1.bf16.msra.mxu0 0
    %154 = vmatprep.subr.bf16.mxu0 0
    %155 = vmatpush1.bf16.msra.mxu0 0
    %156 = vmatprep.subr.bf16.mxu0 0
    %157 = vmatpush1.bf16.msra.mxu0 0
    %158 = vmatprep.subr.bf16.mxu0 0
    %159 = vmatpush1.bf16.msra.mxu0 0
    %160 = vmatprep.subr.bf16.mxu0 0
    %161 = vmatpush1.bf16.msra.mxu0 0
    %162 = vmatprep.subr.bf16.mxu0 0
    %163 = vmatpush1.bf16.msra.mxu0 0
    %164 = vmatprep.subr.bf16.mxu0 0
    %165 = vmatpush1.bf16.msra.mxu0 0
    %166 = vmatprep.subr.bf16.mxu0 0
    %167 = vmatpush1.bf16.msra.mxu0 0
    %168 = vmatprep.mubr.bf16.mxu0 0
    %169 = vmatmul.mubr.bf16.gmra.mrb[0].mxu0 %v116
    %v170 = vpop.f32.mrb[0].mxu0
    %v171 = vadd.f32 %v65, %v170
    %v172 = vpop.f32.mrb[0].mxu0
    %v173 = vpop.f32.mrb[0].mxu0
    %v174 = vadd.f32 %v65, %v173
    %v175 = vpop.f32.mrb[0].mxu0
    %176 = vmatprep.mubr.bf16.mxu0 0
    %177 = vmatmul.mubr.bf16.gmra.mrb[0].mxu0 %v119
    %v178 = vpop.f32.mrb[0].mxu0
    %v179 = vadd.f32 %v65, %v178
    %v180 = vpop.f32.mrb[0].mxu0
    %v181 = vpop.f32.mrb[0].mxu0
    %v182 = vadd.f32 %v65, %v181
    %v183 = vpop.f32.mrb[0].mxu0
    %184 = vmatprep.mubr.bf16.mxu0 0
    %185 = vmatmul.mubr.bf16.gmra.mrb[0].mxu0 %v122
    %v186 = vpop.f32.mrb[0].mxu0
    %v187 = vadd.f32 %v65, %v186
    %v188 = vpop.f32.mrb[0].mxu0
    %v189 = vpop.f32.mrb[0].mxu0
    %v190 = vadd.f32 %v65, %v189
    %v191 = vpop.f32.mrb[0].mxu0
    %192 = vmatprep.mubr.bf16.mxu0 0
    %193 = vmatmul.mubr.bf16.gmra.mrb[0].mxu0 %v125
    %v194 = vpop.f32.mrb[0].mxu0
    %v195 = vadd.f32 %v65, %v194
    %v196 = vpop.f32.mrb[0].mxu0
    %v197 = vpop.f32.mrb[0].mxu0
    %v198 = vadd.f32 %v65, %v197
    %v199 = vpop.f32.mrb[0].mxu0
    %200 = vmatprep.mubr.bf16.mxu0 0
    %201 = vmatmul.mubr.bf16.gmra.mrb[0].mxu0 %v128
    %v202 = vpop.f32.mrb[0].mxu0
    %v203 = vadd.f32 %v65, %v202
    %v204 = vpop.f32.mrb[0].mxu0
    %v205 = vpop.f32.mrb[0].mxu0
    %v206 = vadd.f32 %v65, %v205
    %v207 = vpop.f32.mrb[0].mxu0
    %208 = vmatprep.mubr.bf16.mxu0 0
    %209 = vmatmul.mubr.bf16.gmra.mrb[0].mxu0 %v131
    %v210 = vpop.f32.mrb[0].mxu0
    %v211 = vadd.f32 %v65, %v210
    %v212 = vpop.f32.mrb[0].mxu0
    %v213 = vpop.f32.mrb[0].mxu0
    %v214 = vadd.f32 %v65, %v213
    %v215 = vpop.f32.mrb[0].mxu0
    %216 = vmatprep.mubr.bf16.mxu0 0
    %217 = vmatmul.mubr.bf16.gmra.mrb[0].mxu0 %v134
    %v218 = vpop.f32.mrb[0].mxu0
    %v219 = vadd.f32 %v65, %v218
    %v220 = vpop.f32.mrb[0].mxu0
    %v221 = vpop.f32.mrb[0].mxu0
    %v222 = vadd.f32 %v65, %v221
    %v223 = vpop.f32.mrb[0].mxu0
    %224 = vdwg.mxu0
    %225 = vst [vmem:[#allocation2] sm:$0xff] %v171
    %226 = vst [vmem:[#allocation2 + $0x8] sm:$0xff] %v174
    %227 = vst [vmem:[#allocation2 + $0x10] sm:$0xff] %v179
    %228 = vst [vmem:[#allocation2 + $0x18] sm:$0xff] %v182
    %229 = vst [vmem:[#allocation2 + $0x20] sm:$0xff] %v187
    %230 = vst [vmem:[#allocation2 + $0x28] sm:$0xff] %v190
    %231 = vst [vmem:[#allocation2 + $0x30] sm:$0xff] %v195
    %232 = vst [vmem:[#allocation2 + $0x38] sm:$0xff] %v198
    %233 = vst [vmem:[#allocation2 + $0x40] sm:$0xff] %v203
    %234 = vst [vmem:[#allocation2 + $0x48] sm:$0xff] %v206
    %235 = vst [vmem:[#allocation2 + $0x50] sm:$0xff] %v211
    %236 = vst [vmem:[#allocation2 + $0x58] sm:$0xff] %v214
    %237 = vst [vmem:[#allocation2 + $0x60] sm:$0xff] %v219
    %238 = vst [vmem:[#allocation2 + $0x68] sm:$0xff] %v222
    %v239 = vld [vmem:[%s2] sm:$0xf]
    %v240 = vld [vmem:[%s2 + $0x4] sm:$0xf]
    %v241 = vld [vmem:[%s2 + $0x8] sm:$0xf]
    %v242 = vld [vmem:[%s2 + $0xc] sm:$0xf]
    %v243 = vld [vmem:[#allocation3] sm:$0xff]
    %v244 = vld [vmem:[#allocation3 + $0x8] sm:$0xff]
    %v245 = vld [vmem:[#allocation4] sm:$0xff]
    %v246 = vld [vmem:[#allocation4 + $0x8] sm:$0xff]
    %v247 = vld [vmem:[#allocation2] sm:$0xff]
    %v248 = vld [vmem:[#allocation2 + $0x8] sm:$0xff]
    %v249 = vpack.c.bf16 %v244, %v243
    %v254 = vunpack.c.l.b16 %v239
    %v255 = vunpack.c.l.b16 %v240
    %v256 = vunpack.c.l.b16 %v241
    %v257 = vunpack.c.l.b16 %v242
    %v258 = vpack.c.b16 %v255, %v254
    %v259 = vpack.c.b16 %v257, %v256
    %v263 = vsel %vm114, %v249, 0
    %265 = vmatprep.subr.bf16.mxu0 0
    %266 = vmatpush1.bf16.msra.mxu0 %v258
    %267 = vmatprep.subr.bf16.mxu0 0
    %268 = vmatpush1.bf16.msra.mxu0 %v259
    %269 = vmatprep.subr.bf16.mxu0 0
    %270 = vmatpush1.bf16.msra.mxu0 0
    %271 = vmatprep.subr.bf16.mxu0 0
    %272 = vmatpush1.bf16.msra.mxu0 0
    %273 = vmatprep.subr.bf16.mxu0 0
    %274 = vmatpush1.bf16.msra.mxu0 0
    %275 = vmatprep.subr.bf16.mxu0 0
    %276 = vmatpush1.bf16.msra.mxu0 0
    %277 = vmatprep.subr.bf16.mxu0 0
    %278 = vmatpush1.bf16.msra.mxu0 0
    %279 = vmatprep.subr.bf16.mxu0 0
    %280 = vmatpush1.bf16.msra.mxu0 0
    %281 = vmatprep.subr.bf16.mxu0 0
    %282 = vmatpush1.bf16.msra.mxu0 0
    %283 = vmatprep.subr.bf16.mxu0 0
    %284 = vmatpush1.bf16.msra.mxu0 0
    %285 = vmatprep.subr.bf16.mxu0 0
    %286 = vmatpush1.bf16.msra.mxu0 0
    %287 = vmatprep.subr.bf16.mxu0 0
    %288 = vmatpush1.bf16.msra.mxu0 0
    %289 = vmatprep.subr.bf16.mxu0 0
    %290 = vmatpush1.bf16.msra.mxu0 0
    %291 = vmatprep.subr.bf16.mxu0 0
    %292 = vmatpush1.bf16.msra.mxu0 0
    %293 = vmatprep.subr.bf16.mxu0 0
    %294 = vmatpush1.bf16.msra.mxu0 0
    %295 = vmatprep.subr.bf16.mxu0 0
    %296 = vmatpush1.bf16.msra.mxu0 0
    %297 = vmatprep.mubr.bf16.mxu0 0
    %298 = vmatmul.mubr.bf16.gmra.mrb[0].mxu0 %v263
    %v299 = vpop.f32.mrb[0].mxu0
    %v300 = vadd.f32 0.0, %v299
    %v301 = vpop.f32.mrb[0].mxu0
    %v302 = vpop.f32.mrb[0].mxu0
    %v303 = vadd.f32 0.0, %v302
    %v304 = vpop.f32.mrb[0].mxu0
    %305 = vdwg.mxu0
    %v306 = vadd.f32 %v247, %v300
    %v307 = vadd.f32 %v248, %v303
    %v308 = vxor.u32 %v306, 2147483648
    %v309 = vxor.u32 %v307, 2147483648
    %v310 = vmul.f32 %v308, 1.442695
    %v311 = vpow.pop %v310
    %v312 = vmul.f32 %v309, 1.442695
    %v313 = vpow.pop %v312
    %v314 = vadd.f32 %v311, 1.0
    %v315 = vadd.f32 %v313, 1.0
    %v316 = vrcp.pop %v314
    %v317 = vmul.f32 1.0, %v316
    %v318 = vrcp.pop %v315
    %v319 = vmul.f32 1.0, %v318
    %v320 = vtanh.pop %v306
    %v321 = vtanh.pop %v307
    %324 = vrot.lane.b32.xlu0 %v245, 32
    %v325 = vpop.permute.xlu0 %324
    %326 = vrot.lane.b32.xlu0 %v246, 32
    %v327 = vpop.permute.xlu0 %326
    %v330 = vmul.f32 %v317, %v325
    %v331 = vmul.f32 %v319, %v327
    %334 = vrot.lane.b32.xlu0 %v320, 64
    %v335 = vpop.permute.xlu0 %334
    %336 = vrot.lane.b32.xlu0 %v321, 64
    %v337 = vpop.permute.xlu0 %336
    %v340 = vmul.f32 %v317, %v335
    %v341 = vmul.f32 %v319, %v337
    %344 = vrot.lane.b32.xlu0 %v340, 32
    %v345 = vpop.permute.xlu0 %344
    %346 = vrot.lane.b32.xlu0 %v341, 32
    %v347 = vpop.permute.xlu0 %346
    %v350 = vadd.f32 %v330, %v345
    %v351 = vadd.f32 %v331, %v347
    %v352 = vtanh.pop %v350
    %v353 = vtanh.pop %v351
    %356 = vrot.lane.b32.xlu0 %v352, 64
    %v357 = vpop.permute.xlu0 %356
    %358 = vrot.lane.b32.xlu0 %v353, 64
    %v359 = vpop.permute.xlu0 %358
    %v362 = vmul.f32 %v317, %v357
    %v363 = vmul.f32 %v319, %v359
    %366 = vrot.lane.b32.xlu0 %v362, 32
    %v367 = vpop.permute.xlu0 %366
    %368 = vrot.lane.b32.xlu0 %v363, 32
    %v369 = vpop.permute.xlu0 %368
    %372 = vst.msk [vmem:[%s6] sm:$0xff] %vm114, %v367
    %373 = vst.msk [vmem:[%s6 + $0x8] sm:$0xff] %vm114, %v369
    %v374 = vld [vmem:[#allocation2 + $0x10] sm:$0xff]
    %v375 = vld [vmem:[#allocation2 + $0x18] sm:$0xff]
    %v376 = vpack.c.bf16 %v363, %v362
    %378 = vrot.lane.b32.xlu0 %v376, 32
    %v379 = vpop.permute.xlu0 %378
    %v381 = vsel %vm114, %v379, 0
    %383 = vmatprep.subr.bf16.mxu0 0
    %384 = vmatpush1.bf16.msra.mxu0 %v258
    %385 = vmatprep.subr.bf16.mxu0 0
    %386 = vmatpush1.bf16.msra.mxu0 %v259
    %387 = vmatprep.subr.bf16.mxu0 0
    %388 = vmatpush1.bf16.msra.mxu0 0
    %389 = vmatprep.subr.bf16.mxu0 0
    %390 = vmatpush1.bf16.msra.mxu0 0
    %391 = vmatprep.subr.bf16.mxu0 0
    %392 = vmatpush1.bf16.msra.mxu0 0
    %393 = vmatprep.subr.bf16.mxu0 0
    %394 = vmatpush1.bf16.msra.mxu0 0
    %395 = vmatprep.subr.bf16.mxu0 0
    %396 = vmatpush1.bf16.msra.mxu0 0
    %397 = vmatprep.subr.bf16.mxu0 0
    %398 = vmatpush1.bf16.msra.mxu0 0
    %399 = vmatprep.subr.bf16.mxu0 0
    %400 = vmatpush1.bf16.msra.mxu0 0
    %401 = vmatprep.subr.bf16.mxu0 0
    %402 = vmatpush1.bf16.msra.mxu0 0
    %403 = vmatprep.subr.bf16.mxu0 0
    %404 = vmatpush1.bf16.msra.mxu0 0
    %405 = vmatprep.subr.bf16.mxu0 0
    %406 = vmatpush1.bf16.msra.mxu0 0
    %407 = vmatprep.subr.bf16.mxu0 0
    %408 = vmatpush1.bf16.msra.mxu0 0
    %409 = vmatprep.subr.bf16.mxu0 0
    %410 = vmatpush1.bf16.msra.mxu0 0
    %411 = vmatprep.subr.bf16.mxu0 0
    %412 = vmatpush1.bf16.msra.mxu0 0
    %413 = vmatprep.subr.bf16.mxu0 0
    %414 = vmatpush1.bf16.msra.mxu0 0
    %415 = vmatprep.mubr.bf16.mxu0 0
    %416 = vmatmul.mubr.bf16.gmra.mrb[0].mxu0 %v381
    %v417 = vpop.f32.mrb[0].mxu0
    %v418 = vadd.f32 0.0, %v417
    %v419 = vpop.f32.mrb[0].mxu0
    %v420 = vpop.f32.mrb[0].mxu0
    %v421 = vadd.f32 0.0, %v420
    %v422 = vpop.f32.mrb[0].mxu0
    %423 = vdwg.mxu0
    %v424 = vadd.f32 %v374, %v418
    %v425 = vadd.f32 %v375, %v421
    %v426 = vxor.u32 %v424, 2147483648
    %v427 = vxor.u32 %v425, 2147483648
    %v428 = vmul.f32 %v426, 1.442695
    %v429 = vpow.pop %v428
    %v430 = vmul.f32 %v427, 1.442695
    %v431 = vpow.pop %v430
    %v432 = vadd.f32 %v429, 1.0
    %v433 = vadd.f32 %v431, 1.0
    %v434 = vrcp.pop %v432
    %v435 = vmul.f32 1.0, %v434
    %v436 = vrcp.pop %v433
    %v437 = vmul.f32 1.0, %v436
    %v438 = vtanh.pop %v424
    %v439 = vtanh.pop %v425
    %v440 = vmul.f32 %v435, %v350
    %v441 = vmul.f32 %v437, %v351
    %444 = vrot.lane.b32.xlu0 %v438, 64
    %v445 = vpop.permute.xlu0 %444
    %446 = vrot.lane.b32.xlu0 %v439, 64
    %v447 = vpop.permute.xlu0 %446
    %v450 = vmul.f32 %v435, %v445
    %v451 = vmul.f32 %v437, %v447
    %454 = vrot.lane.b32.xlu0 %v450, 32
    %v455 = vpop.permute.xlu0 %454
    %456 = vrot.lane.b32.xlu0 %v451, 32
    %v457 = vpop.permute.xlu0 %456
    %v460 = vadd.f32 %v440, %v455
    %v461 = vadd.f32 %v441, %v457
    %v462 = vtanh.pop %v460
    %v463 = vtanh.pop %v461
    %466 = vrot.lane.b32.xlu0 %v462, 64
    %v467 = vpop.permute.xlu0 %466
    %468 = vrot.lane.b32.xlu0 %v463, 64
    %v469 = vpop.permute.xlu0 %468
    %v472 = vmul.f32 %v435, %v467
    %v473 = vmul.f32 %v437, %v469
    %476 = vrot.lane.b32.xlu0 %v472, 32
    %v477 = vpop.permute.xlu0 %476
    %478 = vrot.lane.b32.xlu0 %v473, 32
    %v479 = vpop.permute.xlu0 %478
    %482 = vst.msk [vmem:[%s6 + $0x10] sm:$0xff] %vm114, %v477
    %483 = vst.msk [vmem:[%s6 + $0x18] sm:$0xff] %vm114, %v479
    %v484 = vld [vmem:[#allocation2 + $0x20] sm:$0xff]
    %v485 = vld [vmem:[#allocation2 + $0x28] sm:$0xff]
    %v486 = vpack.c.bf16 %v473, %v472
    %488 = vrot.lane.b32.xlu0 %v486, 32
    %v489 = vpop.permute.xlu0 %488
    %v491 = vsel %vm114, %v489, 0
    %493 = vmatprep.subr.bf16.mxu0 0
    %494 = vmatpush1.bf16.msra.mxu0 %v258
    %495 = vmatprep.subr.bf16.mxu0 0
    %496 = vmatpush1.bf16.msra.mxu0 %v259
    %497 = vmatprep.subr.bf16.mxu0 0
    %498 = vmatpush1.bf16.msra.mxu0 0
    %499 = vmatprep.subr.bf16.mxu0 0
    %500 = vmatpush1.bf16.msra.mxu0 0
    %501 = vmatprep.subr.bf16.mxu0 0
    %502 = vmatpush1.bf16.msra.mxu0 0
    %503 = vmatprep.subr.bf16.mxu0 0
    %504 = vmatpush1.bf16.msra.mxu0 0
    %505 = vmatprep.subr.bf16.mxu0 0
    %506 = vmatpush1.bf16.msra.mxu0 0
    %507 = vmatprep.subr.bf16.mxu0 0
    %508 = vmatpush1.bf16.msra.mxu0 0
    %509 = vmatprep.subr.bf16.mxu0 0
    %510 = vmatpush1.bf16.msra.mxu0 0
    %511 = vmatprep.subr.bf16.mxu0 0
    %512 = vmatpush1.bf16.msra.mxu0 0
    %513 = vmatprep.subr.bf16.mxu0 0
    %514 = vmatpush1.bf16.msra.mxu0 0
    %515 = vmatprep.subr.bf16.mxu0 0
    %516 = vmatpush1.bf16.msra.mxu0 0
    %517 = vmatprep.subr.bf16.mxu0 0
    %518 = vmatpush1.bf16.msra.mxu0 0
    %519 = vmatprep.subr.bf16.mxu0 0
    %520 = vmatpush1.bf16.msra.mxu0 0
    %521 = vmatprep.subr.bf16.mxu0 0
    %522 = vmatpush1.bf16.msra.mxu0 0
    %523 = vmatprep.subr.bf16.mxu0 0
    %524 = vmatpush1.bf16.msra.mxu0 0
    %525 = vmatprep.mubr.bf16.mxu0 0
    %526 = vmatmul.mubr.bf16.gmra.mrb[0].mxu0 %v491
    %v527 = vpop.f32.mrb[0].mxu0
    %v528 = vadd.f32 0.0, %v527
    %v529 = vpop.f32.mrb[0].mxu0
    %v530 = vpop.f32.mrb[0].mxu0
    %v531 = vadd.f32 0.0, %v530
    %v532 = vpop.f32.mrb[0].mxu0
    %533 = vdwg.mxu0
    %v534 = vadd.f32 %v484, %v528
    %v535 = vadd.f32 %v485, %v531
    %v536 = vxor.u32 %v534, 2147483648
    %v537 = vxor.u32 %v535, 2147483648
    %v538 = vmul.f32 %v536, 1.442695
    %v539 = vpow.pop %v538
    %v540 = vmul.f32 %v537, 1.442695
    %v541 = vpow.pop %v540
    %v542 = vadd.f32 %v539, 1.0
    %v543 = vadd.f32 %v541, 1.0
    %v544 = vrcp.pop %v542
    %v545 = vmul.f32 1.0, %v544
    %v546 = vrcp.pop %v543
    %v547 = vmul.f32 1.0, %v546
    %v548 = vtanh.pop %v534
    %v549 = vtanh.pop %v535
    %v550 = vmul.f32 %v545, %v460
    %v551 = vmul.f32 %v547, %v461
    %554 = vrot.lane.b32.xlu0 %v548, 64
    %v555 = vpop.permute.xlu0 %554
    %556 = vrot.lane.b32.xlu0 %v549, 64
    %v557 = vpop.permute.xlu0 %556
    %v560 = vmul.f32 %v545, %v555
    %v561 = vmul.f32 %v547, %v557
    %564 = vrot.lane.b32.xlu0 %v560, 32
    %v565 = vpop.permute.xlu0 %564
    %566 = vrot.lane.b32.xlu0 %v561, 32
    %v567 = vpop.permute.xlu0 %566
    %v570 = vadd.f32 %v550, %v565
    %v571 = vadd.f32 %v551, %v567
    %v572 = vtanh.pop %v570
    %v573 = vtanh.pop %v571
    %576 = vrot.lane.b32.xlu0 %v572, 64
    %v577 = vpop.permute.xlu0 %576
    %578 = vrot.lane.b32.xlu0 %v573, 64
    %v579 = vpop.permute.xlu0 %578
    %v582 = vmul.f32 %v545, %v577
    %v583 = vmul.f32 %v547, %v579
    %586 = vrot.lane.b32.xlu0 %v582, 32
    %v587 = vpop.permute.xlu0 %586
    %588 = vrot.lane.b32.xlu0 %v583, 32
    %v589 = vpop.permute.xlu0 %588
    %592 = vst.msk [vmem:[%s6 + $0x20] sm:$0xff] %vm114, %v587
    %593 = vst.msk [vmem:[%s6 + $0x28] sm:$0xff] %vm114, %v589
    %v594 = vld [vmem:[#allocation2 + $0x30] sm:$0xff]
    %v595 = vld [vmem:[#allocation2 + $0x38] sm:$0xff]
    %v596 = vpack.c.bf16 %v583, %v582
    %598 = vrot.lane.b32.xlu0 %v596, 32
    %v599 = vpop.permute.xlu0 %598
    %v601 = vsel %vm114, %v599, 0
    %603 = vmatprep.subr.bf16.mxu0 0
    %604 = vmatpush1.bf16.msra.mxu0 %v258
    %605 = vmatprep.subr.bf16.mxu0 0
    %606 = vmatpush1.bf16.msra.mxu0 %v259
    %607 = vmatprep.subr.bf16.mxu0 0
    %608 = vmatpush1.bf16.msra.mxu0 0
    %609 = vmatprep.subr.bf16.mxu0 0
    %610 = vmatpush1.bf16.msra.mxu0 0
    %611 = vmatprep.subr.bf16.mxu0 0
    %612 = vmatpush1.bf16.msra.mxu0 0
    %613 = vmatprep.subr.bf16.mxu0 0
    %614 = vmatpush1.bf16.msra.mxu0 0
    %615 = vmatprep.subr.bf16.mxu0 0
    %616 = vmatpush1.bf16.msra.mxu0 0
    %617 = vmatprep.subr.bf16.mxu0 0
    %618 = vmatpush1.bf16.msra.mxu0 0
    %619 = vmatprep.subr.bf16.mxu0 0
    %620 = vmatpush1.bf16.msra.mxu0 0
    %621 = vmatprep.subr.bf16.mxu0 0
    %622 = vmatpush1.bf16.msra.mxu0 0
    %623 = vmatprep.subr.bf16.mxu0 0
    %624 = vmatpush1.bf16.msra.mxu0 0
    %625 = vmatprep.subr.bf16.mxu0 0
    %626 = vmatpush1.bf16.msra.mxu0 0
    %627 = vmatprep.subr.bf16.mxu0 0
    %628 = vmatpush1.bf16.msra.mxu0 0
    %629 = vmatprep.subr.bf16.mxu0 0
    %630 = vmatpush1.bf16.msra.mxu0 0
    %631 = vmatprep.subr.bf16.mxu0 0
    %632 = vmatpush1.bf16.msra.mxu0 0
    %633 = vmatprep.subr.bf16.mxu0 0
    %634 = vmatpush1.bf16.msra.mxu0 0
    %635 = vmatprep.mubr.bf16.mxu0 0
    %636 = vmatmul.mubr.bf16.gmra.mrb[0].mxu0 %v601
    %v637 = vpop.f32.mrb[0].mxu0
    %v638 = vadd.f32 0.0, %v637
    %v639 = vpop.f32.mrb[0].mxu0
    %v640 = vpop.f32.mrb[0].mxu0
    %v641 = vadd.f32 0.0, %v640
    %v642 = vpop.f32.mrb[0].mxu0
    %643 = vdwg.mxu0
    %v644 = vadd.f32 %v594, %v638
    %v645 = vadd.f32 %v595, %v641
    %v646 = vxor.u32 %v644, 2147483648
    %v647 = vxor.u32 %v645, 2147483648
    %v648 = vmul.f32 %v646, 1.442695
    %v649 = vpow.pop %v648
    %v650 = vmul.f32 %v647, 1.442695
    %v651 = vpow.pop %v650
    %v652 = vadd.f32 %v649, 1.0
    %v653 = vadd.f32 %v651, 1.0
    %v654 = vrcp.pop %v652
    %v655 = vmul.f32 1.0, %v654
    %v656 = vrcp.pop %v653
    %v657 = vmul.f32 1.0, %v656
    %v658 = vtanh.pop %v644
    %v659 = vtanh.pop %v645
    %v660 = vmul.f32 %v655, %v570
    %v661 = vmul.f32 %v657, %v571
    %664 = vrot.lane.b32.xlu0 %v658, 64
    %v665 = vpop.permute.xlu0 %664
    %666 = vrot.lane.b32.xlu0 %v659, 64
    %v667 = vpop.permute.xlu0 %666
    %v670 = vmul.f32 %v655, %v665
    %v671 = vmul.f32 %v657, %v667
    %674 = vrot.lane.b32.xlu0 %v670, 32
    %v675 = vpop.permute.xlu0 %674
    %676 = vrot.lane.b32.xlu0 %v671, 32
    %v677 = vpop.permute.xlu0 %676
    %v680 = vadd.f32 %v660, %v675
    %v681 = vadd.f32 %v661, %v677
    %v682 = vtanh.pop %v680
    %v683 = vtanh.pop %v681
    %686 = vrot.lane.b32.xlu0 %v682, 64
    %v687 = vpop.permute.xlu0 %686
    %688 = vrot.lane.b32.xlu0 %v683, 64
    %v689 = vpop.permute.xlu0 %688
    %v692 = vmul.f32 %v655, %v687
    %v693 = vmul.f32 %v657, %v689
    %696 = vrot.lane.b32.xlu0 %v692, 32
    %v697 = vpop.permute.xlu0 %696
    %698 = vrot.lane.b32.xlu0 %v693, 32
    %v699 = vpop.permute.xlu0 %698
    %702 = vst.msk [vmem:[%s6 + $0x30] sm:$0xff] %vm114, %v697
    %703 = vst.msk [vmem:[%s6 + $0x38] sm:$0xff] %vm114, %v699
    %v704 = vld [vmem:[#allocation2 + $0x40] sm:$0xff]
    %v705 = vld [vmem:[#allocation2 + $0x48] sm:$0xff]
    %v706 = vpack.c.bf16 %v693, %v692
    %708 = vrot.lane.b32.xlu0 %v706, 32
    %v709 = vpop.permute.xlu0 %708
    %v711 = vsel %vm114, %v709, 0
    %713 = vmatprep.subr.bf16.mxu0 0
    %714 = vmatpush1.bf16.msra.mxu0 %v258
    %715 = vmatprep.subr.bf16.mxu0 0
    %716 = vmatpush1.bf16.msra.mxu0 %v259
    %717 = vmatprep.subr.bf16.mxu0 0
    %718 = vmatpush1.bf16.msra.mxu0 0
    %719 = vmatprep.subr.bf16.mxu0 0
    %720 = vmatpush1.bf16.msra.mxu0 0
    %721 = vmatprep.subr.bf16.mxu0 0
    %722 = vmatpush1.bf16.msra.mxu0 0
    %723 = vmatprep.subr.bf16.mxu0 0
    %724 = vmatpush1.bf16.msra.mxu0 0
    %725 = vmatprep.subr.bf16.mxu0 0
    %726 = vmatpush1.bf16.msra.mxu0 0
    %727 = vmatprep.subr.bf16.mxu0 0
    %728 = vmatpush1.bf16.msra.mxu0 0
    %729 = vmatprep.subr.bf16.mxu0 0
    %730 = vmatpush1.bf16.msra.mxu0 0
    %731 = vmatprep.subr.bf16.mxu0 0
    %732 = vmatpush1.bf16.msra.mxu0 0
    %733 = vmatprep.subr.bf16.mxu0 0
    %734 = vmatpush1.bf16.msra.mxu0 0
    %735 = vmatprep.subr.bf16.mxu0 0
    %736 = vmatpush1.bf16.msra.mxu0 0
    %737 = vmatprep.subr.bf16.mxu0 0
    %738 = vmatpush1.bf16.msra.mxu0 0
    %739 = vmatprep.subr.bf16.mxu0 0
    %740 = vmatpush1.bf16.msra.mxu0 0
    %741 = vmatprep.subr.bf16.mxu0 0
    %742 = vmatpush1.bf16.msra.mxu0 0
    %743 = vmatprep.subr.bf16.mxu0 0
    %744 = vmatpush1.bf16.msra.mxu0 0
    %745 = vmatprep.mubr.bf16.mxu0 0
    %746 = vmatmul.mubr.bf16.gmra.mrb[0].mxu0 %v711
    %v747 = vpop.f32.mrb[0].mxu0
    %v748 = vadd.f32 0.0, %v747
    %v749 = vpop.f32.mrb[0].mxu0
    %v750 = vpop.f32.mrb[0].mxu0
    %v751 = vadd.f32 0.0, %v750
    %v752 = vpop.f32.mrb[0].mxu0
    %753 = vdwg.mxu0
    %v754 = vadd.f32 %v704, %v748
    %v755 = vadd.f32 %v705, %v751
    %v756 = vxor.u32 %v754, 2147483648
    %v757 = vxor.u32 %v755, 2147483648
    %v758 = vmul.f32 %v756, 1.442695
    %v759 = vpow.pop %v758
    %v760 = vmul.f32 %v757, 1.442695
    %v761 = vpow.pop %v760
    %v762 = vadd.f32 %v759, 1.0
    %v763 = vadd.f32 %v761, 1.0
    %v764 = vrcp.pop %v762
    %v765 = vmul.f32 1.0, %v764
    %v766 = vrcp.pop %v763
    %v767 = vmul.f32 1.0, %v766
    %v768 = vtanh.pop %v754
    %v769 = vtanh.pop %v755
    %v770 = vmul.f32 %v765, %v680
    %v771 = vmul.f32 %v767, %v681
    %774 = vrot.lane.b32.xlu0 %v768, 64
    %v775 = vpop.permute.xlu0 %774
    %776 = vrot.lane.b32.xlu0 %v769, 64
    %v777 = vpop.permute.xlu0 %776
    %v780 = vmul.f32 %v765, %v775
    %v781 = vmul.f32 %v767, %v777
    %784 = vrot.lane.b32.xlu0 %v780, 32
    %v785 = vpop.permute.xlu0 %784
    %786 = vrot.lane.b32.xlu0 %v781, 32
    %v787 = vpop.permute.xlu0 %786
    %v790 = vadd.f32 %v770, %v785
    %v791 = vadd.f32 %v771, %v787
    %v792 = vtanh.pop %v790
    %v793 = vtanh.pop %v791
    %796 = vrot.lane.b32.xlu0 %v792, 64
    %v797 = vpop.permute.xlu0 %796
    %798 = vrot.lane.b32.xlu0 %v793, 64
    %v799 = vpop.permute.xlu0 %798
    %v802 = vmul.f32 %v765, %v797
    %v803 = vmul.f32 %v767, %v799
    %806 = vrot.lane.b32.xlu0 %v802, 32
    %v807 = vpop.permute.xlu0 %806
    %808 = vrot.lane.b32.xlu0 %v803, 32
    %v809 = vpop.permute.xlu0 %808
    %812 = vst.msk [vmem:[%s6 + $0x40] sm:$0xff] %vm114, %v807
    %813 = vst.msk [vmem:[%s6 + $0x48] sm:$0xff] %vm114, %v809
    %v814 = vld [vmem:[#allocation2 + $0x50] sm:$0xff]
    %v815 = vld [vmem:[#allocation2 + $0x58] sm:$0xff]
    %v816 = vpack.c.bf16 %v803, %v802
    %818 = vrot.lane.b32.xlu0 %v816, 32
    %v819 = vpop.permute.xlu0 %818
    %v821 = vsel %vm114, %v819, 0
    %823 = vmatprep.subr.bf16.mxu0 0
    %824 = vmatpush1.bf16.msra.mxu0 %v258
    %825 = vmatprep.subr.bf16.mxu0 0
    %826 = vmatpush1.bf16.msra.mxu0 %v259
    %827 = vmatprep.subr.bf16.mxu0 0
    %828 = vmatpush1.bf16.msra.mxu0 0
    %829 = vmatprep.subr.bf16.mxu0 0
    %830 = vmatpush1.bf16.msra.mxu0 0
    %831 = vmatprep.subr.bf16.mxu0 0
    %832 = vmatpush1.bf16.msra.mxu0 0
    %833 = vmatprep.subr.bf16.mxu0 0
    %834 = vmatpush1.bf16.msra.mxu0 0
    %835 = vmatprep.subr.bf16.mxu0 0
    %836 = vmatpush1.bf16.msra.mxu0 0
    %837 = vmatprep.subr.bf16.mxu0 0
    %838 = vmatpush1.bf16.msra.mxu0 0
    %839 = vmatprep.subr.bf16.mxu0 0
    %840 = vmatpush1.bf16.msra.mxu0 0
    %841 = vmatprep.subr.bf16.mxu0 0
    %842 = vmatpush1.bf16.msra.mxu0 0
    %843 = vmatprep.subr.bf16.mxu0 0
    %844 = vmatpush1.bf16.msra.mxu0 0
    %845 = vmatprep.subr.bf16.mxu0 0
    %846 = vmatpush1.bf16.msra.mxu0 0
    %847 = vmatprep.subr.bf16.mxu0 0
    %848 = vmatpush1.bf16.msra.mxu0 0
    %849 = vmatprep.subr.bf16.mxu0 0
    %850 = vmatpush1.bf16.msra.mxu0 0
    %851 = vmatprep.subr.bf16.mxu0 0
    %852 = vmatpush1.bf16.msra.mxu0 0
    %853 = vmatprep.subr.bf16.mxu0 0
    %854 = vmatpush1.bf16.msra.mxu0 0
    %855 = vmatprep.mubr.bf16.mxu0 0
    %856 = vmatmul.mubr.bf16.gmra.mrb[0].mxu0 %v821
    %v857 = vpop.f32.mrb[0].mxu0
    %v858 = vadd.f32 0.0, %v857
    %v859 = vpop.f32.mrb[0].mxu0
    %v860 = vpop.f32.mrb[0].mxu0
    %v861 = vadd.f32 0.0, %v860
    %v862 = vpop.f32.mrb[0].mxu0
    %863 = vdwg.mxu0
    %v864 = vadd.f32 %v814, %v858
    %v865 = vadd.f32 %v815, %v861
    %v866 = vxor.u32 %v864, 2147483648
    %v867 = vxor.u32 %v865, 2147483648
    %v868 = vmul.f32 %v866, 1.442695
    %v869 = vpow.pop %v868
    %v870 = vmul.f32 %v867, 1.442695
    %v871 = vpow.pop %v870
    %v872 = vadd.f32 %v869, 1.0
    %v873 = vadd.f32 %v871, 1.0
    %v874 = vrcp.pop %v872
    %v875 = vmul.f32 1.0, %v874
    %v876 = vrcp.pop %v873
    %v877 = vmul.f32 1.0, %v876
    %v878 = vtanh.pop %v864
    %v879 = vtanh.pop %v865
    %v880 = vmul.f32 %v875, %v790
    %v881 = vmul.f32 %v877, %v791
    %884 = vrot.lane.b32.xlu0 %v878, 64
    %v885 = vpop.permute.xlu0 %884
    %886 = vrot.lane.b32.xlu0 %v879, 64
    %v887 = vpop.permute.xlu0 %886
    %v890 = vmul.f32 %v875, %v885
    %v891 = vmul.f32 %v877, %v887
    %894 = vrot.lane.b32.xlu0 %v890, 32
    %v895 = vpop.permute.xlu0 %894
    %896 = vrot.lane.b32.xlu0 %v891, 32
    %v897 = vpop.permute.xlu0 %896
    %v900 = vadd.f32 %v880, %v895
    %v901 = vadd.f32 %v881, %v897
    %v902 = vtanh.pop %v900
    %v903 = vtanh.pop %v901
    %906 = vrot.lane.b32.xlu0 %v902, 64
    %v907 = vpop.permute.xlu0 %906
    %908 = vrot.lane.b32.xlu0 %v903, 64
    %v909 = vpop.permute.xlu0 %908
    %v912 = vmul.f32 %v875, %v907
    %v913 = vmul.f32 %v877, %v909
    %916 = vrot.lane.b32.xlu0 %v912, 32
    %v917 = vpop.permute.xlu0 %916
    %918 = vrot.lane.b32.xlu0 %v913, 32
    %v919 = vpop.permute.xlu0 %918
    %922 = vst.msk [vmem:[%s6 + $0x50] sm:$0xff] %vm114, %v917
    %923 = vst.msk [vmem:[%s6 + $0x58] sm:$0xff] %vm114, %v919
    %v924 = vld [vmem:[#allocation2 + $0x60] sm:$0xff]
    %v925 = vld [vmem:[#allocation2 + $0x68] sm:$0xff]
    %v926 = vpack.c.bf16 %v913, %v912
    %928 = vrot.lane.b32.xlu0 %v926, 32
    %v929 = vpop.permute.xlu0 %928
    %v931 = vsel %vm114, %v929, 0
    %933 = vmatprep.subr.bf16.mxu0 0
    %934 = vmatpush1.bf16.msra.mxu0 %v258
    %935 = vmatprep.subr.bf16.mxu0 0
    %936 = vmatpush1.bf16.msra.mxu0 %v259
    %937 = vmatprep.subr.bf16.mxu0 0
    %938 = vmatpush1.bf16.msra.mxu0 0
    %939 = vmatprep.subr.bf16.mxu0 0
    %940 = vmatpush1.bf16.msra.mxu0 0
    %941 = vmatprep.subr.bf16.mxu0 0
    %942 = vmatpush1.bf16.msra.mxu0 0
    %943 = vmatprep.subr.bf16.mxu0 0
    %944 = vmatpush1.bf16.msra.mxu0 0
    %945 = vmatprep.subr.bf16.mxu0 0
    %946 = vmatpush1.bf16.msra.mxu0 0
    %947 = vmatprep.subr.bf16.mxu0 0
    %948 = vmatpush1.bf16.msra.mxu0 0
    %949 = vmatprep.subr.bf16.mxu0 0
    %950 = vmatpush1.bf16.msra.mxu0 0
    %951 = vmatprep.subr.bf16.mxu0 0
    %952 = vmatpush1.bf16.msra.mxu0 0
    %953 = vmatprep.subr.bf16.mxu0 0
    %954 = vmatpush1.bf16.msra.mxu0 0
    %955 = vmatprep.subr.bf16.mxu0 0
    %956 = vmatpush1.bf16.msra.mxu0 0
    %957 = vmatprep.subr.bf16.mxu0 0
    %958 = vmatpush1.bf16.msra.mxu0 0
    %959 = vmatprep.subr.bf16.mxu0 0
    %960 = vmatpush1.bf16.msra.mxu0 0
    %961 = vmatprep.subr.bf16.mxu0 0
    %962 = vmatpush1.bf16.msra.mxu0 0
    %963 = vmatprep.subr.bf16.mxu0 0
    %964 = vmatpush1.bf16.msra.mxu0 0
    %965 = vmatprep.mubr.bf16.mxu0 0
    %966 = vmatmul.mubr.bf16.gmra.mrb[0].mxu0 %v931
    %v967 = vpop.f32.mrb[0].mxu0
    %v968 = vadd.f32 0.0, %v967
    %v969 = vpop.f32.mrb[0].mxu0
    %v970 = vpop.f32.mrb[0].mxu0
    %v971 = vadd.f32 0.0, %v970
    %v972 = vpop.f32.mrb[0].mxu0
    %973 = vdwg.mxu0
    %v974 = vadd.f32 %v924, %v968
    %v975 = vadd.f32 %v925, %v971
    %v976 = vxor.u32 %v974, 2147483648
    %v977 = vxor.u32 %v975, 2147483648
    %v978 = vmul.f32 %v976, 1.442695
    %v979 = vpow.pop %v978
    %v980 = vmul.f32 %v977, 1.442695
    %v981 = vpow.pop %v980
    %v982 = vadd.f32 %v979, 1.0
    %v983 = vadd.f32 %v981, 1.0
    %v984 = vrcp.pop %v982
    %v985 = vmul.f32 1.0, %v984
    %v986 = vrcp.pop %v983
    %v987 = vmul.f32 1.0, %v986
    %v988 = vtanh.pop %v974
    %v989 = vtanh.pop %v975
    %v990 = vmul.f32 %v985, %v900
    %v991 = vmul.f32 %v987, %v901
    %994 = vrot.lane.b32.xlu0 %v988, 64
    %v995 = vpop.permute.xlu0 %994
    %996 = vrot.lane.b32.xlu0 %v989, 64
    %v997 = vpop.permute.xlu0 %996
    %v1000 = vmul.f32 %v985, %v995
    %v1001 = vmul.f32 %v987, %v997
    %1004 = vrot.lane.b32.xlu0 %v1000, 32
    %v1005 = vpop.permute.xlu0 %1004
    %1006 = vrot.lane.b32.xlu0 %v1001, 32
    %v1007 = vpop.permute.xlu0 %1006
    %v1010 = vadd.f32 %v990, %v1005
    %v1011 = vadd.f32 %v991, %v1007
    %v1012 = vtanh.pop %v1010
    %v1013 = vtanh.pop %v1011
    %1016 = vrot.lane.b32.xlu0 %v1012, 64
    %v1017 = vpop.permute.xlu0 %1016
    %1018 = vrot.lane.b32.xlu0 %v1013, 64
    %v1019 = vpop.permute.xlu0 %1018
    %v1022 = vmul.f32 %v985, %v1017
    %v1023 = vmul.f32 %v987, %v1019
    %1026 = vrot.lane.b32.xlu0 %v1022, 32
    %v1027 = vpop.permute.xlu0 %1026
    %1028 = vrot.lane.b32.xlu0 %v1023, 32
    %v1029 = vpop.permute.xlu0 %1028
    %1032 = vst.msk [vmem:[%s6 + $0x60] sm:$0xff] %vm114, %v1027
    %1033 = vst.msk [vmem:[%s6 + $0x68] sm:$0xff] %vm114, %v1029
    %1034 = vst.msk [vmem:[#allocation3] sm:$0xff] %vm114, %v1027
    %1035 = vst.msk [vmem:[#allocation3 + $0x8] sm:$0xff] %vm114, %v1029
    %1038 = vrot.lane.b32.xlu0 %v1010, 96
    %v1039 = vpop.permute.xlu0 %1038
    %1040 = vrot.lane.b32.xlu0 %v1011, 96
    %v1041 = vpop.permute.xlu0 %1040
    %1044 = vst.msk [vmem:[#allocation4] sm:$0xff] %vm114, %v1039
    %1045 = vst.msk [vmem:[#allocation4 + $0x8] sm:$0xff] %vm114, %v1041
    // Predicated region
    $region30: #{tpu_custom_call.1} parent=1 // pred_check
      %p1046 = pneg %p29
    $region31: #{tpu_custom_call.1} parent=1 // pred_check_branch
      %1048 = sbr.rel (%p1046) target = $region33
    $region32: #{tpu_custom_call.1} parent=1 // pred_region
      %v1049 = vld [vmem:[#allocation3] sm:$0xff]
      %v1050 = vld [vmem:[#allocation3 + $0x8] sm:$0xff]
      %1051 = vst.msk [vmem:[#allocation5] sm:$0xff] %vm114, %v1049
      %1052 = vst.msk [vmem:[#allocation5 + $0x8] sm:$0xff] %vm114, %v1050
      %v1053 = vld [vmem:[#allocation4] sm:$0xff]
      %v1054 = vld [vmem:[#allocation4 + $0x8] sm:$0xff]
      %1055 = vst.msk [vmem:[#allocation7] sm:$0xff] %vm114, %v1053
      %1056 = vst.msk [vmem:[#allocation7 + $0x8] sm:$0xff] %vm114, %v1054
    $region33: #{tpu_custom_call.1} parent=1 // pred_fallthru
      _
    // Predicated region
    $region34: #{tpu_custom_call.1} parent=1 // pred_check
      _
    $region35: #{tpu_custom_call.1} parent=1 // pred_check_branch
      %1058 = sbr.rel (0) target = $region37
    $region36: #{tpu_custom_call.1} parent=1 // pred_region
      _
    $region37: #{tpu_custom_call.1} parent=1 // pred_fallthru
      _
    // Predicated region
    $region38: #{tpu_custom_call.1} parent=1 // pred_check
      _
    $region39: #{tpu_custom_call.1} parent=1 // pred_check_branch
      %1060 = sbr.rel (0) target = $region41
    $region40: #{tpu_custom_call.1} parent=1 // pred_region
      %s1062 = ssub.s32 256, 256
      %1063 = vsyncadd [#allocation6], %s1062
      %s1064 = sshll.u32 [#allocation5], 4
      %s1065 = int_to_ptr.vmem [resolvable:$true] %s1064
      %1070 = dma.vmem_to_hbm [thread:$0]  %s1065, 256, %s7, [#allocation6], 128, 128, 8
    $region41: #{tpu_custom_call.1} parent=1 // pred_fallthru
      _
    // Predicated region
    $region42: #{tpu_custom_call.1} parent=1 // pred_check
      _
    $region43: #{tpu_custom_call.1} parent=1 // pred_check_branch
      %1072 = sbr.rel (0) target = $region45
    $region44: #{tpu_custom_call.1} parent=1 // pred_region
      %s1074 = ssub.s32 256, 256
      %1075 = vsyncadd [#allocation8], %s1074
      %s1076 = sshll.u32 [#allocation7], 4
      %s1077 = int_to_ptr.vmem [resolvable:$true] %s1076
      %1082 = dma.vmem_to_hbm [thread:$0]  %s1077, 256, %s8, [#allocation8], 128, 128, 8
    $region45: #{tpu_custom_call.1} parent=1 // pred_fallthru
      _
    // Predicated region
    $region46: #{tpu_custom_call.1} parent=1 // pred_check
      _
    $region47: #{tpu_custom_call.1} parent=1 // pred_check_branch
      %1084 = sbr.rel (0) target = $region49
    $region48: #{tpu_custom_call.1} parent=1 // pred_region
      _
    $region49: #{tpu_custom_call.1} parent=1 // pred_fallthru
      _
    // Predicated region
    $region50: #{tpu_custom_call.1} parent=1 // pred_check
      _
    $region51: #{tpu_custom_call.1} parent=1 // pred_check_branch
      %1086 = sbr.rel (0) target = $region53
    $region52: #{tpu_custom_call.1} parent=1 // pred_region
      %1087 = dma.done [#allocation6], 256
    $region53: #{tpu_custom_call.1} parent=1 // pred_fallthru
      _
    // Predicated region
    $region54: #{tpu_custom_call.1} parent=1 // pred_check
      _
    $region55: #{tpu_custom_call.1} parent=1 // pred_check_branch
      %1089 = sbr.rel (0) target = $region57
    $region56: #{tpu_custom_call.1} parent=1 // pred_region
      %1090 = dma.done [#allocation8], 256
    $region57: #{tpu_custom_call.1} parent=1 // pred_fallthru
      _
    %1091 = vsyncpa [#allocation6], 1
    %1092 = vsyncpa [#allocation8], 1

</llo_original>
